<compile_context>
chip_gen: v5e
topology: v5e:2x2
jax: 0.10.0
libtpu: 0.0.40
codegen_flags: <defaults>
</compile_context>

<pallas_src>
import functools

import numpy as np
import jax
import jax.numpy as jnp
from jax.experimental import pallas as pl
from jax.experimental.pallas import tpu as pltpu

_VMEM_LIMIT = 56 * 1024 * 1024   # > default scoped limit on v6e, safe on v7x (64 MiB phys)


def _round_up(x, m):
    return ((x + m - 1) // m) * m


def _pick_q_tile(T, target):
    if T <= target:
        return T
    for cand in (target, 256, 128, 64, 32, 16, 8):
        if cand <= target and T % cand == 0:
            return cand
    return T


def _pick_head_group(H, dk, dv):
    # Smallest group of heads whose packed widths are lane-dense (multiples of 128).
    for hg in range(1, H):
        if H % hg:
            continue
        if (hg * dk) % 128 == 0 and (hg * dv) % 128 == 0:
            return hg
    return H  # fall back to all heads per step (block widths == full array dims)


def _rotate_every_two_matrix(width):
    # y = x @ R  ==  rotate_every_two(x):  y[2i] = -x[2i+1], y[2i+1] = x[2i]
    R = np.zeros((width, width), np.float32)
    idx = np.arange(0, width, 2)
    R[idx + 1, idx] = -1.0
    R[idx, idx + 1] = 1.0
    return R


# ---------------------------------------------------------------------------
# One-time parameter packing (run OUTSIDE jit so the forward pays no re-layout)
# ---------------------------------------------------------------------------
def prepare_mgr_params(wq, wk, wh, wout, gn_w, sin, cos, decay_mask, *,
                       num_heads, dtype=jnp.float32, col_tile=512):
    qk_dim = wq.shape[0]
    E2 = wh.shape[0]
    E = E2 // 2
    hidden = wout.shape[0]
    H = num_heads
    dk = qk_dim // H
    dv = E // H
    scaling = float(dk) ** -0.5
    hg = _pick_head_group(H, dk, dv)

    # kernel-1 packed weight, padded to a lane-dense column tile
    wcat = jnp.concatenate([wq.T, wk.T, wh.T], axis=1).astype(dtype)     # (D, P)
    P = 2 * qk_dim + E2
    tn1 = min(col_tile, _round_up(P, 128))
    P_pad = _round_up(P, tn1)
    if P_pad != P:
        wcat = jnp.pad(wcat, ((0, 0), (0, P_pad - P)))
    colscale = jnp.concatenate([
        jnp.ones((qk_dim,), dtype),
        jnp.full((qk_dim,), scaling, dtype),
        jnp.ones((E2 + (P_pad - P),), dtype)])[None, :]                  # (1, P_pad)

    # kernel-3 packed weight (pre-transposed, column padded)
    wout_t = wout.T.astype(dtype)                                        # (E, hidden)
    tn3 = min(col_tile, _round_up(hidden, 128))
    N_pad = _round_up(hidden, tn3)
    if N_pad != hidden:
        wout_t = jnp.pad(wout_t, ((0, 0), (0, N_pad - hidden)))

    # kernel-2 constants
    sin_full = jnp.tile(sin.astype(jnp.float32), (1, H))                 # (T, qk_dim)
    cos_full = jnp.tile(cos.astype(jnp.float32), (1, H))
    rot = jnp.asarray(_rotate_every_two_matrix(hg * dk), dtype)          # (hg*dk, hg*dk)
    gnw_full = jnp.tile(gn_w.reshape(1, dv).astype(jnp.float32), (1, H)) # (1, E)
    mask = decay_mask.astype(dtype)                                      # (H, T, T)

    return dict(wcat=wcat, colscale=colscale, wout_t=wout_t, sin=sin_full,
                cos=cos_full, rot=rot, gnw=gnw_full, mask=mask)


# ---------------------------------------------------------------------------
# Kernel 1: fused q / k / v / gate projection + SiLU (+ k scaling)
# ---------------------------------------------------------------------------
def _proj_silu_kernel(x_ref, w_ref, s_ref, o_ref):
    h = jnp.dot(x_ref[...], w_ref[...], preferred_element_type=jnp.float32)
    h = h * jax.nn.sigmoid(h)                       # SiLU in f32 (sigmoid on EUP)
    h = h * s_ref[...].astype(jnp.float32)          # k *= key_dim ** -0.5
    o_ref[...] = h.astype(o_ref.dtype)


# ---------------------------------------------------------------------------
# Kernel 2: theta_shift + retention core + group RMSNorm
#           one (batch, head-group, q-tile) per grid step, output in (B,T,E)
# ---------------------------------------------------------------------------
def _retention_gn_kernel(q_ref, k_ref, v_ref, m_ref, sin_ref, cos_ref, rot_ref,
                         gnw_ref, o_ref, *, eps):
    tq = q_ref.shape[1]
    heads = m_ref.shape[0]
    dk = q_ref.shape[2] // heads
    dv = v_ref.shape[2] // heads
    cd = q_ref.dtype                    # MXU operand dtype (bf16 when activations are bf16)

    qi = pl.program_id(2)
    row0 = pl.multiple_of(qi * tq, tq)
    sin_q = sin_ref[pl.ds(row0, tq), :]             # (tq, hg*dk)
    cos_q = cos_ref[pl.ds(row0, tq), :]
    sin_k = sin_ref[...]                            # (T,  hg*dk)
    cos_k = cos_ref[...]

    q = q_ref[0]                                    # (tq, hg*dk)
    k = k_ref[0]                                    # (T,  hg*dk)
    v = v_ref[0]                                    # (T,  hg*dv)
    R = rot_ref[...]

    # theta_shift(x) = x*cos + rotate_every_two(x)*sin; the pairwise rotation is the
    # tiny matmul x @ R (exact, runs on the MXU, no cross-lane shuffles needed).
    q_rot = jnp.dot(q, R, preferred_element_type=jnp.float32)
    k_rot = jnp.dot(k, R, preferred_element_type=jnp.float32)
    qr = q.astype(jnp.float32) * cos_q + q_rot * sin_q
    kr = k.astype(jnp.float32) * cos_k + k_rot * sin_k

    outs = []
    for h in range(heads):                          # static unroll over heads in group
        qh = qr[:, h * dk:(h + 1) * dk].astype(cd)
        kh = kr[:, h * dk:(h + 1) * dk].astype(cd)
        s = jax.lax.dot_general(qh, kh, (((1,), (1,)), ((), ())),
                                preferred_element_type=jnp.float32)      # (tq, T)
        s = s * m_ref[h].astype(jnp.float32)
        denom = jnp.clip(jnp.sum(jnp.abs(s), axis=-1, keepdims=True), 1.0, 5e4)
        s = s * pl.reciprocal(denom, approx=True)   # EUP; row-scale error cancels in RMSNorm
        o = jnp.dot(s.astype(cd), v[:, h * dv:(h + 1) * dv],
                    preferred_element_type=jnp.float32)                  # (tq, dv)
        var = jnp.mean(o * o, axis=-1, keepdims=True)
        outs.append(o * jax.lax.rsqrt(var + eps))
    out = outs[0] if heads == 1 else jnp.concatenate(outs, axis=-1)      # (tq, hg*dv)
    o_ref[0] = (out * gnw_ref[...]).astype(o_ref.dtype)                  # lane-dense store


# ---------------------------------------------------------------------------
# Kernel 3: gate multiply + output projection
# ---------------------------------------------------------------------------
def _gated_out_kernel(z_ref, g_ref, w_ref, o_ref):
    zg = (z_ref[...] * g_ref[...]).astype(w_ref.dtype)
    y = jnp.dot(zg, w_ref[...], preferred_element_type=jnp.float32)
    o_ref[...] = y.astype(o_ref.dtype)


# ---------------------------------------------------------------------------
# Full parallel / dense=False forward
# ---------------------------------------------------------------------------
@functools.partial(jax.jit, static_argnames=("num_heads", "qk_dim", "expansion_dim",
                                              "hidden_size", "eps", "row_tile",
                                              "col_tile", "q_tile"))
def multi_scale_gau_retention(x, wcat, colscale, wout_t, sin, cos, rot, gnw, mask, *,
                              num_heads, qk_dim, expansion_dim, hidden_size,
                              eps=1e-6, row_tile=512, col_tile=512, q_tile=256):
    """x: (B, T, hidden).  Packed params from prepare_mgr_params.
    Returns (output, k_curr, v_curr) matching the PyTorch forward (parallel path)."""
    B, T, D = x.shape
    H = num_heads
    QK = qk_dim
    E = expansion_dim
    dk = QK // H
    dv = E // H
    hg = rot.shape[0] // dk
    M = B * T
    P_pad = wcat.shape[1]
    N_pad = wout_t.shape[1]

    cp2 = pltpu.CompilerParams(dimension_semantics=("parallel", "parallel"),
                               vmem_limit_bytes=_VMEM_LIMIT)
    cp3 = pltpu.CompilerParams(dimension_semantics=("parallel", "parallel", "parallel"),
                               vmem_limit_bytes=_VMEM_LIMIT)

    # ---- kernel 1: fused projections (row + column tiled) -------------------
    tm = min(row_tile, _round_up(M, 8))
    M_pad = _round_up(M, tm)
    tn1 = P_pad if P_pad <= col_tile else col_tile
    x2d = x.reshape(M, D)
    if M_pad != M:
        x2d = jnp.pad(x2d, ((0, M_pad - M), (0, 0)))

    proj = pl.pallas_call(
        _proj_silu_kernel,
        out_shape=jax.ShapeDtypeStruct((M_pad, P_pad), x.dtype),
        grid=(M_pad // tm, P_pad // tn1),
        in_specs=[
            pl.BlockSpec((tm, D), lambda i, j: (i, 0)),
            pl.BlockSpec((D, tn1), lambda i, j: (0, j)),
            pl.BlockSpec((1, tn1), lambda i, j: (0, j)),
        ],
        out_specs=pl.BlockSpec((tm, tn1), lambda i, j: (i, j)),
        compiler_params=cp2,
    )(x2d, wcat, colscale)

    proj = proj[:M]
    q2 = proj[:, :QK].reshape(B, T, QK)
    k2 = proj[:, QK:2 * QK].reshape(B, T, QK)
    v3 = proj[:, 2 * QK:2 * QK + E].reshape(B, T, E)
    gate = proj[:, 2 * QK + E:2 * QK + 2 * E]

    # ---- kernel 2: fused theta_shift + retention + group RMSNorm ------------
    tq = _pick_q_tile(T, q_tile)
    n_qt = T // tq
    n_hg = H // hg
    hdk = hg * dk
    hdv = hg * dv

    ret = pl.pallas_call(
        functools.partial(_retention_gn_kernel, eps=eps),
        out_shape=jax.ShapeDtypeStruct((B, T, E), x.dtype),
        grid=(B, n_hg, n_qt),
        in_specs=[
            pl.BlockSpec((1, tq, hdk), lambda b, g, qi: (b, qi, g)),    # q
            pl.BlockSpec((1, T, hdk), lambda b, g, qi: (b, 0, g)),      # k (full T)
            pl.BlockSpec((1, T, hdv), lambda b, g, qi: (b, 0, g)),      # v (full T)
            pl.BlockSpec((hg, tq, T), lambda b, g, qi: (g, qi, 0)),     # decay mask slice
            pl.BlockSpec((T, hdk), lambda b, g, qi: (0, g)),            # sin
            pl.BlockSpec((T, hdk), lambda b, g, qi: (0, g)),            # cos
            pl.BlockSpec((hdk, hdk), lambda b, g, qi: (0, 0)),          # rotation matrix
            pl.BlockSpec((1, hdv), lambda b, g, qi: (0, g)),            # group-norm weight
        ],
        out_specs=pl.BlockSpec((1, tq, hdv), lambda b, g, qi: (b, qi, g)),
        compiler_params=cp3,
    )(q2, k2, v3, mask, sin, cos, rot, gnw)

    # ---- kernel 3: gate multiply + output projection -------------------------
    tn3 = N_pad if N_pad <= col_tile else col_tile
    z2 = ret.reshape(M, E)                                  # already (B,T,E) — no transpose
    gate2 = gate
    if M_pad != M:
        z2 = jnp.pad(z2, ((0, M_pad - M), (0, 0)))
        gate2 = jnp.pad(gate2, ((0, M_pad - M), (0, 0)))

    out = pl.pallas_call(
        _gated_out_kernel,
        out_shape=jax.ShapeDtypeStruct((M_pad, N_pad), x.dtype),
        grid=(M_pad // tm, N_pad // tn3),
        in_specs=[
            pl.BlockSpec((tm, E), lambda i, j: (i, 0)),
            pl.BlockSpec((tm, E), lambda i, j: (i, 0)),
            pl.BlockSpec((E, tn3), lambda i, j: (0, j)),
        ],
        out_specs=pl.BlockSpec((tm, tn3), lambda i, j: (i, j)),
        compiler_params=cp2,
    )(z2, gate2, wout_t)

    output = out[:M, :hidden_size].reshape(B, T, hidden_size)
    return output, k2, v3


# ---------------------------------------------------------------------------
# Pure-JAX reference mirroring the PyTorch forward (parallel, dense=False)
# ---------------------------------------------------------------------------
def _rotate_every_two(x):
    x1 = x[..., 0::2]
    x2 = x[..., 1::2]
    return jnp.stack((-x2, x1), axis=-1).reshape(x.shape)


def _theta_shift(x, sin, cos):
    return x * cos + _rotate_every_two(x) * sin


def _reference_forward(x, wq, wk, wh, wout, gn_w, sin, cos, decay_mask, *, num_heads, eps):
    hp = jax.lax.Precision.HIGHEST
    B, T, _ = x.shape
    H = num_heads
    qk_dim = wq.shape[0]
    E = wh.shape[0] // 2
    dk = qk_dim // H
    dv = E // H
    scaling = float(dk) ** -0.5

    q = jax.nn.silu(jnp.dot(x, wq.T, precision=hp))
    k = jax.nn.silu(jnp.dot(x, wk.T, precision=hp)) * scaling
    hgate = jax.nn.silu(jnp.dot(x, wh.T, precision=hp))
    v, gate = jnp.split(hgate, 2, axis=-1)
    k_curr, v_curr = k, v

    q4 = jnp.transpose(q.reshape(B, T, H, dk), (0, 2, 1, 3))
    k4 = jnp.transpose(k.reshape(B, T, H, dk), (0, 2, 1, 3))
    qr = _theta_shift(q4, sin, cos)
    kr = _theta_shift(k4, sin, cos)
    vr = jnp.transpose(v.reshape(B, T, H, dv), (0, 2, 1, 3))

    qk_mat = jnp.einsum("bhqd,bhkd->bhqk", qr, kr, precision=hp)
    qk_mat = qk_mat * decay_mask[None]
    denom = jnp.clip(jnp.sum(jnp.abs(qk_mat), axis=-1, keepdims=True), 1.0, 5e4)
    qk_mat = qk_mat / denom
    out = jnp.einsum("bhqk,bhkd->bhqd", qk_mat, vr, precision=hp)
    out = jnp.transpose(out, (0, 2, 1, 3))                   # (B, T, H, dv)

    var = jnp.mean(out * out, axis=-1, keepdims=True)
    out = out * jax.lax.rsqrt(var + eps) * gn_w
    out = out.reshape(B, T, E) * gate
    out = jnp.dot(out, wout.T, precision=hp)
    return out, k_curr, v_curr


if __name__ == "__main__":
    # Small config consistent with the module:
    #   hidden_size=64, query_key_dim=64, num_heads=2, v_factor=2
    #   -> key_dim=32, expansion_dim=128, per-head value dim=64
    B, T = 2, 16
    hidden, qk_dim, H, factor = 64, 64, 2, 2
    E = hidden * factor
    dk = qk_dim // H
    dv = E // H
    eps = 1e-6

    key = jax.random.PRNGKey(0)
    ks = jax.random.split(key, 6)
    x = jax.random.normal(ks[0], (B, T, hidden), jnp.float32)
    wq = jax.random.normal(ks[1], (qk_dim, hidden), jnp.float32) * 0.05      # q_proj.weight
    wk = jax.random.normal(ks[2], (qk_dim, hidden), jnp.float32) * 0.05      # k_proj.weight
    wh = jax.random.normal(ks[3], (2 * E, hidden), jnp.float32) * 0.05       # to_hidden[0].weight
    wout = jax.random.normal(ks[4], (hidden, E), jnp.float32) * 0.05         # to_out[0].weight
    gn_w = 1.0 + 0.05 * jax.random.normal(ks[5], (dv,), jnp.float32)         # group_norm.weight

    # rel_pos: rotary-style sin/cos (T, dk) + per-head decay mask (H, T, T)
    pos = jnp.arange(T, dtype=jnp.float32)
    half = dk // 2
    inv_freq = 1.0 / (10000.0 ** (jnp.arange(half, dtype=jnp.float32) / half))
    ang = jnp.repeat(pos[:, None] * inv_freq[None, :], 2, axis=-1)           # (T, dk)
    sin, cos = jnp.sin(ang), jnp.cos(ang)

    idx = jnp.arange(T)
    diff = idx[:, None] - idx[None, :]
    causal = diff >= 0
    gammas = 1.0 - 2.0 ** (-5.0 - jnp.arange(H, dtype=jnp.float32))
    dm = jnp.where(causal[None],
                   gammas[:, None, None] ** jnp.maximum(diff, 0)[None].astype(jnp.float32),
                   0.0)
    dm = dm / jnp.sqrt(jnp.sum(dm, axis=-1, keepdims=True))                  # (H, T, T)

    params = prepare_mgr_params(wq, wk, wh, wout, gn_w, sin, cos, dm,
                                num_heads=H, dtype=x.dtype)

    y, k_curr, v_curr = multi_scale_gau_retention(
        x, params["wcat"], params["colscale"], params["wout_t"],
        params["sin"], params["cos"], params["rot"], params["gnw"], params["mask"],
        num_heads=H, qk_dim=qk_dim, expansion_dim=E, hidden_size=hidden, eps=eps)
    y = jax.block_until_ready(y)

    y_ref, k_ref, v_ref = _reference_forward(
        x, wq, wk, wh, wout, gn_w, sin, cos, dm, num_heads=H, eps=eps)

    assert y.shape == (B, T, hidden)
    assert jnp.allclose(y, y_ref, atol=2e-4, rtol=2e-4), float(jnp.max(jnp.abs(y - y_ref)))
    assert jnp.allclose(k_curr, k_ref, atol=2e-4, rtol=2e-4)
    assert jnp.allclose(v_curr, v_ref, atol=2e-4, rtol=2e-4)
    print("KERNEL_OK")
</pallas_src>

<mosaic_0001>
module attributes {stable_mosaic.version = 11 : i64} {
  func.func @_proj_silu_kernel(%arg0: i32, %arg1: i32, %arg2: memref<32x64xf32, #tpu.memory_space<vmem>>, %arg3: memref<64x384xf32, #tpu.memory_space<vmem>>, %arg4: memref<1x384xf32, #tpu.memory_space<vmem>>, %arg5: memref<32x384xf32, #tpu.memory_space<vmem>>) attributes {dimension_semantics = [#tpu.dimension_semantics<parallel>, #tpu.dimension_semantics<parallel>], iteration_bounds = array<i64: 1, 1>, scalar_prefetch = 0 : i64, scratch_operands = 0 : i64, tpu.core_type = #tpu.core_type<tc>, window_params = [{transform_indices = @transform_0, window_bounds = array<i64: 32, 64>}, {transform_indices = @transform_1, window_bounds = array<i64: 64, 384>}, {transform_indices = @transform_2, window_bounds = array<i64: 1, 384>}, {transform_indices = @transform_3, window_bounds = array<i64: 32, 384>}]} {
    %c0 = arith.constant 0 : index
    %c0_0 = arith.constant 0 : index
    %0 = vector.load %arg2[%c0, %c0_0] : memref<32x64xf32, #tpu.memory_space<vmem>>, vector<32x64xf32>
    %c0_1 = arith.constant 0 : index
    %c0_2 = arith.constant 0 : index
    %1 = vector.load %arg3[%c0_1, %c0_2] : memref<64x384xf32, #tpu.memory_space<vmem>>, vector<64x384xf32>
    %cst = arith.constant dense<0.000000e+00> : vector<32x384xf32>
    %2 = tpu.matmul %0, %1, %cst {dimension_numbers = #tpu.dot_dimension_numbers<[1], [0], [0], [1], [0, 0, 1, 1], [], []>} : vector<32x64xf32>, vector<64x384xf32>, vector<32x384xf32> -> vector<32x384xf32>
    %3 = arith.negf %2 : vector<32x384xf32>
    %4 = math.exp %3 : vector<32x384xf32>
    %cst_3 = arith.constant 1.000000e+00 : f32
    %5 = vector.broadcast %cst_3 : f32 to vector<32x384xf32>
    %6 = arith.addf %5, %4 : vector<32x384xf32>
    %7 = arith.divf %5, %6 : vector<32x384xf32>
    %8 = arith.mulf %2, %7 : vector<32x384xf32>
    %c0_4 = arith.constant 0 : index
    %c0_5 = arith.constant 0 : index
    %9 = vector.load %arg4[%c0_4, %c0_5] : memref<1x384xf32, #tpu.memory_space<vmem>>, vector<1x384xf32>
    %10 = vector.broadcast %9 : vector<1x384xf32> to vector<32x384xf32>
    %11 = arith.mulf %8, %10 : vector<32x384xf32>
    %c0_6 = arith.constant 0 : index
    %c0_7 = arith.constant 0 : index
    %12 = vector.load %arg5[%c0_6, %c0_7] : memref<32x384xf32, #tpu.memory_space<vmem>>, vector<32x384xf32>
    tpu.vector_store %arg5[%c0_6, %c0_7], %11 {strides = array<i32>} : memref<32x384xf32, #tpu.memory_space<vmem>>, vector<32x384xf32>,
    return
  }
  func.func @transform_0(%arg0: i32, %arg1: i32) -> (i32, i32) {
    %c0_i32 = arith.constant 0 : i32
    %c0_i32_0 = arith.constant 0 : i32
    return %arg0, %c0_i32 : i32, i32
  }
  func.func @transform_1(%arg0: i32, %arg1: i32) -> (i32, i32) {
    %c0_i32 = arith.constant 0 : i32
    %c0_i32_0 = arith.constant 0 : i32
    return %c0_i32, %arg1 : i32, i32
  }
  func.func @transform_2(%arg0: i32, %arg1: i32) -> (i32, i32) {
    %c0_i32 = arith.constant 0 : i32
    %c0_i32_0 = arith.constant 0 : i32
    return %c0_i32, %arg1 : i32, i32
  }
  func.func @transform_3(%arg0: i32, %arg1: i32) -> (i32, i32) {
    %c0_i32 = arith.constant 0 : i32
    return %arg0, %arg1 : i32, i32
  }
}

module attributes {stable_mosaic.version = 11 : i64} {
  func.func @_retention_gn_kernel(%arg0: i32, %arg1: i32, %arg2: i32, %arg3: memref<1x16x64xf32, #tpu.memory_space<vmem>>, %arg4: memref<1x16x64xf32, #tpu.memory_space<vmem>>, %arg5: memref<1x16x128xf32, #tpu.memory_space<vmem>>, %arg6: memref<2x16x16xf32, #tpu.memory_space<vmem>>, %arg7: memref<16x64xf32, #tpu.memory_space<vmem>>, %arg8: memref<16x64xf32, #tpu.memory_space<vmem>>, %arg9: memref<64x64xf32, #tpu.memory_space<vmem>>, %arg10: memref<1x128xf32, #tpu.memory_space<vmem>>, %arg11: memref<1x16x128xf32, #tpu.memory_space<vmem>>) attributes {dimension_semantics = [#tpu.dimension_semantics<parallel>, #tpu.dimension_semantics<parallel>, #tpu.dimension_semantics<parallel>], iteration_bounds = array<i64: 2, 1, 1>, scalar_prefetch = 0 : i64, scratch_operands = 0 : i64, tpu.core_type = #tpu.core_type<tc>, window_params = [{transform_indices = @transform_0, window_bounds = array<i64: 1, 16, 64>}, {transform_indices = @transform_1, window_bounds = array<i64: 1, 16, 64>}, {transform_indices = @transform_2, window_bounds = array<i64: 1, 16, 128>}, {transform_indices = @transform_3, window_bounds = array<i64: 2, 16, 16>}, {transform_indices = @transform_4, window_bounds = array<i64: 16, 64>}, {transform_indices = @transform_5, window_bounds = array<i64: 16, 64>}, {pipeline_mode = #tpu.pipeline_mode<synchronous>, transform_indices = @transform_6, window_bounds = array<i64: 64, 64>}, {transform_indices = @transform_7, window_bounds = array<i64: 1, 128>}, {transform_indices = @transform_8, window_bounds = array<i64: 1, 16, 128>}]} {
    %c16_i32 = arith.constant 16 : i32
    %0 = arith.muli %arg2, %c16_i32 : i32
    %1 = tpu.assume_multiple %0, 16 : i32
    %2 = arith.index_cast %1 : i32 to index
    %c0 = arith.constant 0 : index
    %3 = vector.load %arg7[%2, %c0] : memref<16x64xf32, #tpu.memory_space<vmem>>, vector<16x64xf32>
    %4 = arith.index_cast %1 : i32 to index
    %c0_0 = arith.constant 0 : index
    %5 = vector.load %arg8[%4, %c0_0] : memref<16x64xf32, #tpu.memory_space<vmem>>, vector<16x64xf32>
    %c0_1 = arith.constant 0 : index
    %c0_2 = arith.constant 0 : index
    %6 = vector.load %arg7[%c0_1, %c0_2] : memref<16x64xf32, #tpu.memory_space<vmem>>, vector<16x64xf32>
    %c0_3 = arith.constant 0 : index
    %c0_4 = arith.constant 0 : index
    %7 = vector.load %arg8[%c0_3, %c0_4] : memref<16x64xf32, #tpu.memory_space<vmem>>, vector<16x64xf32>
    %c0_5 = arith.constant 0 : index
    %c0_6 = arith.constant 0 : index
    %c0_7 = arith.constant 0 : index
    %8 = vector.load %arg3[%c0_5, %c0_6, %c0_7] : memref<1x16x64xf32, #tpu.memory_space<vmem>>, vector<1x16x64xf32>
    %9 = vector.shape_cast %8 : vector<1x16x64xf32> to vector<16x64xf32>
    %c0_8 = arith.constant 0 : index
    %c0_9 = arith.constant 0 : index
    %c0_10 = arith.constant 0 : index
    %10 = vector.load %arg4[%c0_8, %c0_9, %c0_10] : memref<1x16x64xf32, #tpu.memory_space<vmem>>, vector<1x16x64xf32>
    %11 = vector.shape_cast %10 : vector<1x16x64xf32> to vector<16x64xf32>
    %c0_11 = arith.constant 0 : index
    %c0_12 = arith.constant 0 : index
    %c0_13 = arith.constant 0 : index
    %12 = vector.load %arg5[%c0_11, %c0_12, %c0_13] : memref<1x16x128xf32, #tpu.memory_space<vmem>>, vector<1x16x128xf32>
    %13 = vector.shape_cast %12 : vector<1x16x128xf32> to vector<16x128xf32>
    %c0_14 = arith.constant 0 : index
    %c0_15 = arith.constant 0 : index
    %14 = vector.load %arg9[%c0_14, %c0_15] : memref<64x64xf32, #tpu.memory_space<vmem>>, vector<64x64xf32>
    %cst = arith.constant dense<0.000000e+00> : vector<16x64xf32>
    %15 = tpu.matmul %9, %14, %cst {dimension_numbers = #tpu.dot_dimension_numbers<[1], [0], [0], [1], [0, 0, 1, 1], [], []>} : vector<16x64xf32>, vector<64x64xf32>, vector<16x64xf32> -> vector<16x64xf32>
    %cst_16 = arith.constant dense<0.000000e+00> : vector<16x64xf32>
    %16 = tpu.matmul %11, %14, %cst_16 {dimension_numbers = #tpu.dot_dimension_numbers<[1], [0], [0], [1], [0, 0, 1, 1], [], []>} : vector<16x64xf32>, vector<64x64xf32>, vector<16x64xf32> -> vector<16x64xf32>
    %17 = arith.mulf %9, %5 : vector<16x64xf32>
    %18 = arith.mulf %15, %3 : vector<16x64xf32>
    %19 = arith.addf %17, %18 : vector<16x64xf32>
    %20 = arith.mulf %11, %7 : vector<16x64xf32>
    %21 = arith.mulf %16, %6 : vector<16x64xf32>
    %22 = arith.addf %20, %21 : vector<16x64xf32>
    %23 = vector.extract_strided_slice %19 {offsets = [0, 0], sizes = [16, 32], strides = [1, 1]} : vector<16x64xf32> to vector<16x32xf32>
    %24 = vector.extract_strided_slice %22 {offsets = [0, 0], sizes = [16, 32], strides = [1, 1]} : vector<16x64xf32> to vector<16x32xf32>
    %cst_17 = arith.constant dense<0.000000e+00> : vector<16x16xf32>
    %25 = tpu.matmul %23, %24, %cst_17 {dimension_numbers = #tpu.dot_dimension_numbers<[1], [1], [0], [0], [0, 0, 1, 0], [], []>} : vector<16x32xf32>, vector<16x32xf32>, vector<16x16xf32> -> vector<16x16xf32>
    %c0_18 = arith.constant 0 : index
    %c0_19 = arith.constant 0 : index
    %c0_20 = arith.constant 0 : index
    %26 = vector.load %arg6[%c0_18, %c0_19, %c0_20] : memref<2x16x16xf32, #tpu.memory_space<vmem>>, vector<1x16x16xf32>
    %27 = vector.shape_cast %26 : vector<1x16x16xf32> to vector<16x16xf32>
    %28 = arith.mulf %25, %27 : vector<16x16xf32>
    %29 = math.absf %28 : vector<16x16xf32>
    %cst_21 = arith.constant dense<0.000000e+00> : vector<16xf32>
    %30 = vector.multi_reduction <add>, %29, %cst_21 [1] : vector<16x16xf32> to vector<16xf32>
    %31 = vector.shape_cast %30 : vector<16xf32> to vector<16x1xf32>
    %cst_22 = arith.constant 1.000000e+00 : f32
    %cst_23 = arith.constant 5.000000e+04 : f32
    %32 = vector.broadcast %cst_22 : f32 to vector<16x1xf32>
    %33 = arith.maximumf %32, %31 : vector<16x1xf32>
    %34 = vector.broadcast %cst_23 : f32 to vector<16x1xf32>
    %35 = arith.minimumf %34, %33 : vector<16x1xf32>
    %36 = tpu.reciprocal %35 {approx = true} : vector<16x1xf32> -> vector<16x1xf32>
    %37 = vector.broadcast %36 : vector<16x1xf32> to vector<16x16xf32>
    %38 = arith.mulf %28, %37 : vector<16x16xf32>
    %39 = vector.extract_strided_slice %13 {offsets = [0, 0], sizes = [16, 64], strides = [1, 1]} : vector<16x128xf32> to vector<16x64xf32>
    %cst_24 = arith.constant dense<0.000000e+00> : vector<16x64xf32>
    %40 = tpu.matmul %38, %39, %cst_24 {dimension_numbers = #tpu.dot_dimension_numbers<[1], [0], [0], [1], [0, 0, 1, 1], [], []>} : vector<16x16xf32>, vector<16x64xf32>, vector<16x64xf32> -> vector<16x64xf32>
    %41 = arith.mulf %40, %40 : vector<16x64xf32>
    %cst_25 = arith.constant dense<0.000000e+00> : vector<16xf32>
    %42 = vector.multi_reduction <add>, %41, %cst_25 [1] : vector<16x64xf32> to vector<16xf32>
    %43 = vector.shape_cast %42 : vector<16xf32> to vector<16x1xf32>
    %cst_26 = arith.constant 6.400000e+01 : f32
    %44 = vector.broadcast %cst_26 : f32 to vector<16x1xf32>
    %45 = arith.divf %43, %44 : vector<16x1xf32>
    %cst_27 = arith.constant 9.99999997E-7 : f32
    %46 = vector.broadcast %cst_27 : f32 to vector<16x1xf32>
    %47 = arith.addf %45, %46 : vector<16x1xf32>
    %48 = math.rsqrt %47 : vector<16x1xf32>
    %49 = vector.broadcast %48 : vector<16x1xf32> to vector<16x64xf32>
    %50 = arith.mulf %40, %49 : vector<16x64xf32>
    %51 = vector.extract_strided_slice %19 {offsets = [0, 32], sizes = [16, 32], strides = [1, 1]} : vector<16x64xf32> to vector<16x32xf32>
    %52 = vector.extract_strided_slice %22 {offsets = [0, 32], sizes = [16, 32], strides = [1, 1]} : vector<16x64xf32> to vector<16x32xf32>
    %cst_28 = arith.constant dense<0.000000e+00> : vector<16x16xf32>
    %53 = tpu.matmul %51, %52, %cst_28 {dimension_numbers = #tpu.dot_dimension_numbers<[1], [1], [0], [0], [0, 0, 1, 0], [], []>} : vector<16x32xf32>, vector<16x32xf32>, vector<16x16xf32> -> vector<16x16xf32>
    %c1 = arith.constant 1 : index
    %c0_29 = arith.constant 0 : index
    %c0_30 = arith.constant 0 : index
    %54 = vector.load %arg6[%c1, %c0_29, %c0_30] : memref<2x16x16xf32, #tpu.memory_space<vmem>>, vector<1x16x16xf32>
    %55 = vector.shape_cast %54 : vector<1x16x16xf32> to vector<16x16xf32>
    %56 = arith.mulf %53, %55 : vector<16x16xf32>
    %57 = math.absf %56 : vector<16x16xf32>
    %cst_31 = arith.constant dense<0.000000e+00> : vector<16xf32>
    %58 = vector.multi_reduction <add>, %57, %cst_31 [1] : vector<16x16xf32> to vector<16xf32>
    %59 = vector.shape_cast %58 : vector<16xf32> to vector<16x1xf32>
    %cst_32 = arith.constant 1.000000e+00 : f32
    %cst_33 = arith.constant 5.000000e+04 : f32
    %60 = vector.broadcast %cst_32 : f32 to vector<16x1xf32>
    %61 = arith.maximumf %60, %59 : vector<16x1xf32>
    %62 = vector.broadcast %cst_33 : f32 to vector<16x1xf32>
    %63 = arith.minimumf %62, %61 : vector<16x1xf32>
    %64 = tpu.reciprocal %63 {approx = true} : vector<16x1xf32> -> vector<16x1xf32>
    %65 = vector.broadcast %64 : vector<16x1xf32> to vector<16x16xf32>
    %66 = arith.mulf %56, %65 : vector<16x16xf32>
    %67 = vector.extract_strided_slice %13 {offsets = [0, 64], sizes = [16, 64], strides = [1, 1]} : vector<16x128xf32> to vector<16x64xf32>
    %cst_34 = arith.constant dense<0.000000e+00> : vector<16x64xf32>
    %68 = tpu.matmul %66, %67, %cst_34 {dimension_numbers = #tpu.dot_dimension_numbers<[1], [0], [0], [1], [0, 0, 1, 1], [], []>} : vector<16x16xf32>, vector<16x64xf32>, vector<16x64xf32> -> vector<16x64xf32>
    %69 = arith.mulf %68, %68 : vector<16x64xf32>
    %cst_35 = arith.constant dense<0.000000e+00> : vector<16xf32>
    %70 = vector.multi_reduction <add>, %69, %cst_35 [1] : vector<16x64xf32> to vector<16xf32>
    %71 = vector.shape_cast %70 : vector<16xf32> to vector<16x1xf32>
    %cst_36 = arith.constant 6.400000e+01 : f32
    %72 = vector.broadcast %cst_36 : f32 to vector<16x1xf32>
    %73 = arith.divf %71, %72 : vector<16x1xf32>
    %cst_37 = arith.constant 9.99999997E-7 : f32
    %74 = vector.broadcast %cst_37 : f32 to vector<16x1xf32>
    %75 = arith.addf %73, %74 : vector<16x1xf32>
    %76 = math.rsqrt %75 : vector<16x1xf32>
    %77 = vector.broadcast %76 : vector<16x1xf32> to vector<16x64xf32>
    %78 = arith.mulf %68, %77 : vector<16x64xf32>
    %79 = tpu.concatenate %50, %78 in 1 : vector<16x64xf32>, vector<16x64xf32> -> vector<16x128xf32>
    %c0_38 = arith.constant 0 : index
    %c0_39 = arith.constant 0 : index
    %80 = vector.load %arg10[%c0_38, %c0_39] : memref<1x128xf32, #tpu.memory_space<vmem>>, vector<1x128xf32>
    %81 = vector.broadcast %80 : vector<1x128xf32> to vector<16x128xf32>
    %82 = arith.mulf %79, %81 : vector<16x128xf32>
    %c0_40 = arith.constant 0 : index
    %c0_41 = arith.constant 0 : index
    %c0_42 = arith.constant 0 : index
    %83 = vector.load %arg11[%c0_40, %c0_41, %c0_42] : memref<1x16x128xf32, #tpu.memory_space<vmem>>, vector<1x16x128xf32>
    %84 = vector.shape_cast %83 : vector<1x16x128xf32> to vector<16x128xf32>
    %85 = vector.shape_cast %82 : vector<16x128xf32> to vector<1x16x128xf32>
    tpu.vector_store %arg11[%c0_40, %c0_41, %c0_42], %85 {strides = array<i32>} : memref<1x16x128xf32, #tpu.memory_space<vmem>>, vector<1x16x128xf32>,
    return
  }
  func.func @transform_0(%arg0: i32, %arg1: i32, %arg2: i32) -> (i32, i32, i32) {
    %c0_i32 = arith.constant 0 : i32
    return %arg0, %arg2, %arg1 : i32, i32, i32
  }
  func.func @transform_1(%arg0: i32, %arg1: i32, %arg2: i32) -> (i32, i32, i32) {
    %c0_i32 = arith.constant 0 : i32
    %c0_i32_0 = arith.constant 0 : i32
    return %arg0, %c0_i32, %arg1 : i32, i32, i32
  }
  func.func @transform_2(%arg0: i32, %arg1: i32, %arg2: i32) -> (i32, i32, i32) {
    %c0_i32 = arith.constant 0 : i32
    %c0_i32_0 = arith.constant 0 : i32
    return %arg0, %c0_i32, %arg1 : i32, i32, i32
  }
  func.func @transform_3(%arg0: i32, %arg1: i32, %arg2: i32) -> (i32, i32, i32) {
    %c0_i32 = arith.constant 0 : i32
    %c0_i32_0 = arith.constant 0 : i32
    return %arg1, %arg2, %c0_i32 : i32, i32, i32
  }
  func.func @transform_4(%arg0: i32, %arg1: i32, %arg2: i32) -> (i32, i32) {
    %c0_i32 = arith.constant 0 : i32
    %c0_i32_0 = arith.constant 0 : i32
    return %c0_i32, %arg1 : i32, i32
  }
  func.func @transform_5(%arg0: i32, %arg1: i32, %arg2: i32) -> (i32, i32) {
    %c0_i32 = arith.constant 0 : i32
    %c0_i32_0 = arith.constant 0 : i32
    return %c0_i32, %arg1 : i32, i32
  }
  func.func @transform_6(%arg0: i32, %arg1: i32, %arg2: i32) -> (i32, i32) {
    %c0_i32 = arith.constant 0 : i32
    %c0_i32_0 = arith.constant 0 : i32
    %c0_i32_1 = arith.constant 0 : i32
    return %c0_i32, %c0_i32_0 : i32, i32
  }
  func.func @transform_7(%arg0: i32, %arg1: i32, %arg2: i32) -> (i32, i32) {
    %c0_i32 = arith.constant 0 : i32
    %c0_i32_0 = arith.constant 0 : i32
    return %c0_i32, %arg1 : i32, i32
  }
  func.func @transform_8(%arg0: i32, %arg1: i32, %arg2: i32) -> (i32, i32, i32) {
    %c0_i32 = arith.constant 0 : i32
    return %arg0, %arg2, %arg1 : i32, i32, i32
  }
}

module attributes {stable_mosaic.version = 11 : i64} {
  func.func @_gated_out_kernel(%arg0: i32, %arg1: i32, %arg2: memref<32x128xf32, #tpu.memory_space<vmem>>, %arg3: memref<32x128xf32, #tpu.memory_space<vmem>>, %arg4: memref<128x128xf32, #tpu.memory_space<vmem>>, %arg5: memref<32x128xf32, #tpu.memory_space<vmem>>) attributes {dimension_semantics = [#tpu.dimension_semantics<parallel>, #tpu.dimension_semantics<parallel>], iteration_bounds = array<i64: 1, 1>, scalar_prefetch = 0 : i64, scratch_operands = 0 : i64, tpu.core_type = #tpu.core_type<tc>, window_params = [{transform_indices = @transform_0, window_bounds = array<i64: 32, 128>}, {transform_indices = @transform_1, window_bounds = array<i64: 32, 128>}, {transform_indices = @transform_2, window_bounds = array<i64: 128, 128>}, {transform_indices = @transform_3, window_bounds = array<i64: 32, 128>}]} {
    %c0 = arith.constant 0 : index
    %c0_0 = arith.constant 0 : index
    %0 = vector.load %arg2[%c0, %c0_0] : memref<32x128xf32, #tpu.memory_space<vmem>>, vector<32x128xf32>
    %c0_1 = arith.constant 0 : index
    %c0_2 = arith.constant 0 : index
    %1 = vector.load %arg3[%c0_1, %c0_2] : memref<32x128xf32, #tpu.memory_space<vmem>>, vector<32x128xf32>
    %2 = arith.mulf %0, %1 : vector<32x128xf32>
    %c0_3 = arith.constant 0 : index
    %c0_4 = arith.constant 0 : index
    %3 = vector.load %arg4[%c0_3, %c0_4] : memref<128x128xf32, #tpu.memory_space<vmem>>, vector<128x128xf32>
    %cst = arith.constant dense<0.000000e+00> : vector<32x128xf32>
    %4 = tpu.matmul %2, %3, %cst {dimension_numbers = #tpu.dot_dimension_numbers<[1], [0], [0], [1], [0, 0, 1, 1], [], []>} : vector<32x128xf32>, vector<128x128xf32>, vector<32x128xf32> -> vector<32x128xf32>
    %c0_5 = arith.constant 0 : index
    %c0_6 = arith.constant 0 : index
    %5 = vector.load %arg5[%c0_5, %c0_6] : memref<32x128xf32, #tpu.memory_space<vmem>>, vector<32x128xf32>
    tpu.vector_store %arg5[%c0_5, %c0_6], %4 {strides = array<i32>} : memref<32x128xf32, #tpu.memory_space<vmem>>, vector<32x128xf32>,
    return
  }
  func.func @transform_0(%arg0: i32, %arg1: i32) -> (i32, i32) {
    %c0_i32 = arith.constant 0 : i32
    %c0_i32_0 = arith.constant 0 : i32
    return %arg0, %c0_i32 : i32, i32
  }
  func.func @transform_1(%arg0: i32, %arg1: i32) -> (i32, i32) {
    %c0_i32 = arith.constant 0 : i32
    %c0_i32_0 = arith.constant 0 : i32
    return %arg0, %c0_i32 : i32, i32
  }
  func.func @transform_2(%arg0: i32, %arg1: i32) -> (i32, i32) {
    %c0_i32 = arith.constant 0 : i32
    %c0_i32_0 = arith.constant 0 : i32
    return %c0_i32, %arg1 : i32, i32
  }
  func.func @transform_3(%arg0: i32, %arg1: i32) -> (i32, i32) {
    %c0_i32 = arith.constant 0 : i32
    return %arg0, %arg1 : i32, i32
  }
}

</mosaic_0001>

<llo_original>
// kernel: multi_scale_gau_retention.5
$region0: #{multi_scale_gau_retention.5}
  #allocation0 [shape = 'u32[]', space=smem, size = 0x4, offset = 0x4, fixed_abs, tag = 'smem constant byte address 0x4 - core index']
  #allocation1 [shape = 'u32[72,128]{1,0:T(1,128)}', space=vmem, size = 0x9000, scoped, tag = 'internal scratch']
  %s0 = inlined_call_operand.vmem [shape: f32[32,128], index: 0, kind: input, shape index: {}]
  %s1 = inlined_call_operand.vmem [shape: f32[32,128], index: 1, kind: input, shape index: {}]
  %s2 = inlined_call_operand.vmem [shape: f32[128,128], index: 2, kind: input, shape index: {}]
  %s3 = inlined_call_operand.hbm [shape: f32[32,128], index: 3, kind: output, shape index: {}]
  %s4 = sld [smem:[#allocation0]]
  $region22: #{multi_scale_gau_retention.5} parent=0
    _
  %s6 = ssub.s32 1, %s4
  %s7 = scalar_select 0, %s6, %s4
  $region1: #{multi_scale_gau_retention.5} parent=0
    #allocation2 [shape = 'u8[16384]{0}', space=vmem, size = 0x4000, scoped, tag = 'output window, operand 0, single buffered']
    #allocation3 [shape = 's32[1]{0}', space=sflag, size = 0x4, scoped, tag = 'scoped memory for multi_scale_gau_retention.5']
    %8 = vsyncpa [#allocation3], 0
    // Predicated region
    $region2: #{multi_scale_gau_retention.5} parent=1 // pred_check
      _
    $region3: #{multi_scale_gau_retention.5} parent=1 // pred_check_branch
      %10 = sbr.rel (0) target = $region5
    $region4: #{multi_scale_gau_retention.5} parent=1 // pred_region
      _
    $region5: #{multi_scale_gau_retention.5} parent=1 // pred_fallthru
      _
    // Predicated region
    $region6: #{multi_scale_gau_retention.5} parent=1 // pred_check
      _
    $region7: #{multi_scale_gau_retention.5} parent=1 // pred_check_branch
      %12 = sbr.rel (0) target = $region9
    $region8: #{multi_scale_gau_retention.5} parent=1 // pred_region
      _
    $region9: #{multi_scale_gau_retention.5} parent=1 // pred_fallthru
      _
    // Predicated region
    $region10: #{multi_scale_gau_retention.5} parent=1 // pred_check
      _
    $region11: #{multi_scale_gau_retention.5} parent=1 // pred_check_branch
      %14 = sbr.rel (0) target = $region13
    $region12: #{multi_scale_gau_retention.5} parent=1 // pred_region
      _
    $region13: #{multi_scale_gau_retention.5} parent=1 // pred_fallthru
      _
    %v15 = vld [vmem:[%s0] sm:$0xff]
    %v16 = vld [vmem:[%s0 + $0x8] sm:$0xff]
    %v17 = vld [vmem:[%s0 + $0x10] sm:$0xff]
    %v18 = vld [vmem:[%s0 + $0x18] sm:$0xff]
    %v19 = vld [vmem:[%s1] sm:$0xff]
    %v20 = vld [vmem:[%s1 + $0x8] sm:$0xff]
    %v21 = vld [vmem:[%s1 + $0x10] sm:$0xff]
    %v22 = vld [vmem:[%s1 + $0x18] sm:$0xff]
    %v23 = vmul.f32 %v15, %v19
    %v24 = vmul.f32 %v16, %v20
    %v25 = vmul.f32 %v17, %v21
    %v26 = vmul.f32 %v18, %v22
    %v27 = vld [vmem:[%s2] sm:$0xff]
    %v28 = vld [vmem:[%s2 + $0x8] sm:$0xff]
    %v29 = vld [vmem:[%s2 + $0x10] sm:$0xff]
    %v30 = vld [vmem:[%s2 + $0x18] sm:$0xff]
    %v31 = vld [vmem:[%s2 + $0x20] sm:$0xff]
    %v32 = vld [vmem:[%s2 + $0x28] sm:$0xff]
    %v33 = vld [vmem:[%s2 + $0x30] sm:$0xff]
    %v34 = vld [vmem:[%s2 + $0x38] sm:$0xff]
    %v35 = vld [vmem:[%s2 + $0x40] sm:$0xff]
    %v36 = vld [vmem:[%s2 + $0x48] sm:$0xff]
    %v37 = vld [vmem:[%s2 + $0x50] sm:$0xff]
    %v38 = vld [vmem:[%s2 + $0x58] sm:$0xff]
    %v39 = vld [vmem:[%s2 + $0x60] sm:$0xff]
    %v40 = vld [vmem:[%s2 + $0x68] sm:$0xff]
    %v41 = vld [vmem:[%s2 + $0x70] sm:$0xff]
    %v42 = vld [vmem:[%s2 + $0x78] sm:$0xff]
    %43 = vmatpush.msra.mxu0 %v42
    %44 = vmatpush.msra.mxu0 %v41
    %45 = vmatpush.msra.mxu0 %v40
    %46 = vmatpush.msra.mxu0 %v39
    %47 = vmatpush.msra.mxu0 %v38
    %48 = vmatpush.msra.mxu0 %v37
    %49 = vmatpush.msra.mxu0 %v36
    %50 = vmatpush.msra.mxu0 %v35
    %51 = vmatpush.msra.mxu0 %v34
    %52 = vmatpush.msra.mxu0 %v33
    %53 = vmatpush.msra.mxu0 %v32
    %54 = vmatpush.msra.mxu0 %v31
    %55 = vmatpush.msra.mxu0 %v30
    %56 = vmatpush.msra.mxu0 %v29
    %57 = vmatpush.msra.mxu0 %v28
    %58 = vmatpush.msra.mxu0 %v27
    %59 = vmatmul.f32.gmra.mxu0 %v23
    %v60 = vpop.f32.mrf.mxu0
    %v61 = vadd.f32 0.0, %v60
    %62 = vmatmul.f32.gmra.mxu0 %v24
    %v63 = vpop.f32.mrf.mxu0
    %v64 = vadd.f32 0.0, %v63
    %65 = vmatmul.f32.gmra.mxu0 %v25
    %v66 = vpop.f32.mrf.mxu0
    %v67 = vadd.f32 0.0, %v66
    %68 = vmatmul.f32.gmra.mxu0 %v26
    %v69 = vpop.f32.mrf.mxu0
    %v70 = vadd.f32 0.0, %v69
    %71 = vdwg.mxu0
    %72 = vst [vmem:[#allocation2] sm:$0xff] %v61
    %73 = vst [vmem:[#allocation2 + $0x8] sm:$0xff] %v64
    %74 = vst [vmem:[#allocation2 + $0x10] sm:$0xff] %v67
    %75 = vst [vmem:[#allocation2 + $0x18] sm:$0xff] %v70
    // Predicated region
    $region14: #{multi_scale_gau_retention.5} parent=1 // pred_check
      _
    $region15: #{multi_scale_gau_retention.5} parent=1 // pred_check_branch
      %77 = sbr.rel (0) target = $region17
    $region16: #{multi_scale_gau_retention.5} parent=1 // pred_region
      %79 = vsyncadd [#allocation3], 0
      %s80 = sshll.u32 [#allocation2], 4
      %s81 = int_to_ptr.vmem [resolvable:$true] %s80
      %s82 = sshll.u32 %s3, 4
      %s83 = int_to_ptr.hbm [resolvable:$true] %s82
      %88 = dma.vmem_to_hbm [thread:$0]  %s81, 512, %s83, [#allocation3], 128, 128, 8
    $region17: #{multi_scale_gau_retention.5} parent=1 // pred_fallthru
      _
    // Predicated region
    $region18: #{multi_scale_gau_retention.5} parent=1 // pred_check
      _
    $region19: #{multi_scale_gau_retention.5} parent=1 // pred_check_branch
      %90 = sbr.rel (0) target = $region21
    $region20: #{multi_scale_gau_retention.5} parent=1 // pred_region
      %92 = dma.done [#allocation3], 512
    $region21: #{multi_scale_gau_retention.5} parent=1 // pred_fallthru
      _
    %93 = vsyncpa [#allocation3], 1

// kernel: multi_scale_gau_retention.4
$region0: #{multi_scale_gau_retention.4}
  #allocation0 [shape = 'u32[]', space=smem, size = 0x4, offset = 0x4, fixed_abs, tag = 'smem constant byte address 0x4 - core index']
  #allocation1 [shape = 'u32[72,128]{1,0:T(1,128)}', space=vmem, size = 0x9000, scoped, tag = 'internal scratch']
  %s0 = inlined_call_operand.vmem [shape: f32[2,16,64], index: 0, kind: input, shape index: {}]
  %s1 = inlined_call_operand.vmem [shape: f32[2,16,64], index: 1, kind: input, shape index: {}]
  %s2 = inlined_call_operand.vmem [shape: f32[2,16,128], index: 2, kind: input, shape index: {}]
  %s3 = inlined_call_operand.vmem [shape: f32[2,16,16], index: 3, kind: input, shape index: {}]
  %s4 = inlined_call_operand.vmem [shape: f32[16,64], index: 4, kind: input, shape index: {}]
  %s5 = inlined_call_operand.vmem [shape: f32[16,64], index: 5, kind: input, shape index: {}]
  %s6 = inlined_call_operand.vmem [shape: f32[64,64], index: 6, kind: input, shape index: {}]
  %s7 = inlined_call_operand.vmem [shape: f32[1,128], index: 7, kind: input, shape index: {}]
  %s8 = inlined_call_operand.vmem [shape: f32[2,16,128], index: 8, kind: output, shape index: {}]
  %s9 = sld [smem:[#allocation0]]
  $region65: #{multi_scale_gau_retention.4} parent=0
    _
  %s11 = ssub.s32 1, %s9
  %s12 = scalar_select 0, %s11, %s9
  loop: start=0, step=1, limit=4
  $region2: #{multi_scale_gau_retention.4} parent=0 // loop_pre_header
    _
  $region3: #{multi_scale_gau_retention.4} parent=0 // loop_header
    %s14 = sphi 0, %s18
    %p15 = scmp.ge.s32.totalorder %s14, 4
    %s21 = sphi 0, %s40
    %s22 = sphi 0, %s36
    %s23 = sphi 0, %s32
    %s24 = sphi 0, %s21
    %s25 = sphi 0, %s22
    %s26 = sphi 0, %s23
    %s27 = sphi 0, %s24
    %s28 = sphi 0, %s25
    %s29 = sphi 0, %s26
    %s47 = sphi 0, %s49
    %s50 = sphi 0, %s47
    %s51 = sphi 0, %s50
    %s67 = sphi 0, %s51
    %s75 = sphi 0, %s77
    %s78 = sphi 0, %s75
    %s79 = sphi 0, %s78
    %s95 = sphi 0, %s79
    %s103 = sphi 0, %s105
    %s106 = sphi 0, %s103
    %s107 = sphi 0, %s106
    %s123 = sphi 0, %s107
    %s131 = sphi 0, %s133
    %s134 = sphi 0, %s131
    %s135 = sphi 0, %s134
    %s151 = sphi 0, %s135
    %s157 = sphi 0, %s159
    %s160 = sphi 0, %s157
    %s161 = sphi 0, %s160
    %s177 = sphi 0, %s161
    %s183 = sphi 0, %s185
    %s186 = sphi 0, %s183
    %s187 = sphi 0, %s186
    %s203 = sphi 0, %s187
    %s207 = sphi 0, %s207
    %s209 = sphi 0, %s207
    %s210 = sphi 0, %s209
    %s224 = sphi 0, %s210
    %s230 = sphi 0, %s232
    %s233 = sphi 0, %s230
    %s234 = sphi 0, %s233
    %s250 = sphi 0, %s234
    %s260 = sphi 0, %s262
    %s263 = sphi 0, %s260
    %s264 = sphi 0, %s263
    %s280 = sphi 0, %s264
  $region4: #{multi_scale_gau_retention.4} parent=0 // loop_header_branch
    %17 = sbr.rel (%p15) target = $region8
  $region5: #{multi_scale_gau_retention.4} parent=0 // loop_body
    %s19 = ssub.s32 %s14, 1
    %s20 = ssub.s32 %s14, 2
    %s30 = sadd.s32 1, %s23
    %p31 = scmp.ge.s32.totalorder %s30, 1
    %s32 = scalar_select %p31, 0, %s30
    %s33 = sadd.s32 1, %s22
    %s34 = scalar_select %p31, %s33, %s22
    %p35 = scmp.ge.s32.totalorder %s34, 1
    %s36 = scalar_select %p35, 0, %s34
    %s37 = sadd.s32 1, %s21
    %s38 = scalar_select %p35, %s37, %s21
    %p39 = scmp.ge.s32.totalorder %s38, 2
    %s40 = scalar_select %p39, 0, %s38
    %s41 = ssub.s32 %s21, %s40
    %s42 = ssub.s32 %s23, %s32
    %s43 = sor.u32 %s41, %s42
    %s44 = ssub.s32 %s22, %s36
    %s45 = sor.u32 %s43, %s44
    %p46 = scmp.eq.s32.totalorder %s45, 0
    %s48 = sadd.s32 %s47, 1
    %s49 = scalar_select %p46, %s47, %s48
    %p52 = pneg %p46
    %p53 = scmp.eq.s32.totalorder %s14, 1
    %p54 = por %p52, %p53
    %p55 = scmp.ne.s32.totalorder %s47, %s50
    %p56 = scmp.eq.s32.totalorder %s14, 0
    %p57 = por %p55, %p56
    %p58 = scmp.ne.s32.totalorder %s47, %s50
    %p59 = scmp.eq.s32.totalorder %s19, 1
    %p60 = por %p58, %p59
    %p61 = scmp.ne.s32.totalorder %s50, %s51
    %p62 = scmp.eq.s32.totalorder %s19, 0
    %p63 = por %p61, %p62
    %p64 = scmp.ne.s32.totalorder %s50, %s51
    %p65 = scmp.eq.s32.totalorder %s20, 1
    %p66 = por %p64, %p65
    %p68 = scmp.ne.s32.totalorder %s51, %s67
    %p69 = scmp.eq.s32.totalorder %s20, 0
    %p70 = por %p68, %p69
    %s71 = ssub.s32 %s21, %s40
    %s72 = ssub.s32 %s22, %s36
    %s73 = sor.u32 %s71, %s72
    %p74 = scmp.eq.s32.totalorder %s73, 0
    %s76 = sadd.s32 %s75, 1
    %s77 = scalar_select %p74, %s75, %s76
    %p80 = pneg %p74
    %p81 = scmp.eq.s32.totalorder %s14, 1
    %p82 = por %p80, %p81
    %p83 = scmp.ne.s32.totalorder %s75, %s78
    %p84 = scmp.eq.s32.totalorder %s14, 0
    %p85 = por %p83, %p84
    %p86 = scmp.ne.s32.totalorder %s75, %s78
    %p87 = scmp.eq.s32.totalorder %s19, 1
    %p88 = por %p86, %p87
    %p89 = scmp.ne.s32.totalorder %s78, %s79
    %p90 = scmp.eq.s32.totalorder %s19, 0
    %p91 = por %p89, %p90
    %p92 = scmp.ne.s32.totalorder %s78, %s79
    %p93 = scmp.eq.s32.totalorder %s20, 1
    %p94 = por %p92, %p93
    %p96 = scmp.ne.s32.totalorder %s79, %s95
    %p97 = scmp.eq.s32.totalorder %s20, 0
    %p98 = por %p96, %p97
    %s99 = ssub.s32 %s21, %s40
    %s100 = ssub.s32 %s22, %s36
    %s101 = sor.u32 %s99, %s100
    %p102 = scmp.eq.s32.totalorder %s101, 0
    %s104 = sadd.s32 %s103, 1
    %s105 = scalar_select %p102, %s103, %s104
    %p108 = pneg %p102
    %p109 = scmp.eq.s32.totalorder %s14, 1
    %p110 = por %p108, %p109
    %p111 = scmp.ne.s32.totalorder %s103, %s106
    %p112 = scmp.eq.s32.totalorder %s14, 0
    %p113 = por %p111, %p112
    %p114 = scmp.ne.s32.totalorder %s103, %s106
    %p115 = scmp.eq.s32.totalorder %s19, 1
    %p116 = por %p114, %p115
    %p117 = scmp.ne.s32.totalorder %s106, %s107
    %p118 = scmp.eq.s32.totalorder %s19, 0
    %p119 = por %p117, %p118
    %p120 = scmp.ne.s32.totalorder %s106, %s107
    %p121 = scmp.eq.s32.totalorder %s20, 1
    %p122 = por %p120, %p121
    %p124 = scmp.ne.s32.totalorder %s107, %s123
    %p125 = scmp.eq.s32.totalorder %s20, 0
    %p126 = por %p124, %p125
    %s127 = ssub.s32 %s22, %s36
    %s128 = ssub.s32 %s23, %s32
    %s129 = sor.u32 %s127, %s128
    %p130 = scmp.eq.s32.totalorder %s129, 0
    %s132 = sadd.s32 %s131, 1
    %s133 = scalar_select %p130, %s131, %s132
    %p136 = pneg %p130
    %p137 = scmp.eq.s32.totalorder %s14, 1
    %p138 = por %p136, %p137
    %p139 = scmp.ne.s32.totalorder %s131, %s134
    %p140 = scmp.eq.s32.totalorder %s14, 0
    %p141 = por %p139, %p140
    %p142 = scmp.ne.s32.totalorder %s131, %s134
    %p143 = scmp.eq.s32.totalorder %s19, 1
    %p144 = por %p142, %p143
    %p145 = scmp.ne.s32.totalorder %s134, %s135
    %p146 = scmp.eq.s32.totalorder %s19, 0
    %p147 = por %p145, %p146
    %p148 = scmp.ne.s32.totalorder %s134, %s135
    %p149 = scmp.eq.s32.totalorder %s20, 1
    %p150 = por %p148, %p149
    %p152 = scmp.ne.s32.totalorder %s135, %s151
    %p153 = scmp.eq.s32.totalorder %s20, 0
    %p154 = por %p152, %p153
    %s155 = ssub.s32 %s22, %s36
    %p156 = scmp.eq.s32.totalorder %s155, 0
    %s158 = sadd.s32 %s157, 1
    %s159 = scalar_select %p156, %s157, %s158
    %p162 = pneg %p156
    %p163 = scmp.eq.s32.totalorder %s14, 1
    %p164 = por %p162, %p163
    %p165 = scmp.ne.s32.totalorder %s157, %s160
    %p166 = scmp.eq.s32.totalorder %s14, 0
    %p167 = por %p165, %p166
    %p168 = scmp.ne.s32.totalorder %s157, %s160
    %p169 = scmp.eq.s32.totalorder %s19, 1
    %p170 = por %p168, %p169
    %p171 = scmp.ne.s32.totalorder %s160, %s161
    %p172 = scmp.eq.s32.totalorder %s19, 0
    %p173 = por %p171, %p172
    %p174 = scmp.ne.s32.totalorder %s160, %s161
    %p175 = scmp.eq.s32.totalorder %s20, 1
    %p176 = por %p174, %p175
    %p178 = scmp.ne.s32.totalorder %s161, %s177
    %p179 = scmp.eq.s32.totalorder %s20, 0
    %p180 = por %p178, %p179
    %s181 = ssub.s32 %s22, %s36
    %p182 = scmp.eq.s32.totalorder %s181, 0
    %s184 = sadd.s32 %s183, 1
    %s185 = scalar_select %p182, %s183, %s184
    %p188 = pneg %p182
    %p189 = scmp.eq.s32.totalorder %s14, 1
    %p190 = por %p188, %p189
    %p191 = scmp.ne.s32.totalorder %s183, %s186
    %p192 = scmp.eq.s32.totalorder %s14, 0
    %p193 = por %p191, %p192
    %p194 = scmp.ne.s32.totalorder %s183, %s186
    %p195 = scmp.eq.s32.totalorder %s19, 1
    %p196 = por %p194, %p195
    %p197 = scmp.ne.s32.totalorder %s186, %s187
    %p198 = scmp.eq.s32.totalorder %s19, 0
    %p199 = por %p197, %p198
    %p200 = scmp.ne.s32.totalorder %s186, %s187
    %p201 = scmp.eq.s32.totalorder %s20, 1
    %p202 = por %p200, %p201
    %p204 = scmp.ne.s32.totalorder %s187, %s203
    %p205 = scmp.eq.s32.totalorder %s20, 0
    %p206 = por %p204, %p205
    %s208 = sadd.s32 %s207, 1
    %p211 = scmp.eq.s32.totalorder %s14, 1
    %p212 = scmp.ne.s32.totalorder %s207, %s209
    %p213 = scmp.eq.s32.totalorder %s14, 0
    %p214 = por %p212, %p213
    %p215 = scmp.ne.s32.totalorder %s207, %s209
    %p216 = scmp.eq.s32.totalorder %s19, 1
    %p217 = por %p215, %p216
    %p218 = scmp.ne.s32.totalorder %s209, %s210
    %p219 = scmp.eq.s32.totalorder %s19, 0
    %p220 = por %p218, %p219
    %p221 = scmp.ne.s32.totalorder %s209, %s210
    %p222 = scmp.eq.s32.totalorder %s20, 1
    %p223 = por %p221, %p222
    %p225 = scmp.ne.s32.totalorder %s210, %s224
    %p226 = scmp.eq.s32.totalorder %s20, 0
    %p227 = por %p225, %p226
    %s228 = ssub.s32 %s22, %s36
    %p229 = scmp.eq.s32.totalorder %s228, 0
    %s231 = sadd.s32 %s230, 1
    %s232 = scalar_select %p229, %s230, %s231
    %p235 = pneg %p229
    %p236 = scmp.eq.s32.totalorder %s14, 1
    %p237 = por %p235, %p236
    %p238 = scmp.ne.s32.totalorder %s230, %s233
    %p239 = scmp.eq.s32.totalorder %s14, 0
    %p240 = por %p238, %p239
    %p241 = scmp.ne.s32.totalorder %s230, %s233
    %p242 = scmp.eq.s32.totalorder %s19, 1
    %p243 = por %p241, %p242
    %p244 = scmp.ne.s32.totalorder %s233, %s234
    %p245 = scmp.eq.s32.totalorder %s19, 0
    %p246 = por %p244, %p245
    %p247 = scmp.ne.s32.totalorder %s233, %s234
    %p248 = scmp.eq.s32.totalorder %s20, 1
    %p249 = por %p247, %p248
    %p251 = scmp.ne.s32.totalorder %s234, %s250
    %p252 = scmp.eq.s32.totalorder %s20, 0
    %p253 = por %p251, %p252
    %s254 = ssub.s32 %s21, %s40
    %s255 = ssub.s32 %s23, %s32
    %s256 = sor.u32 %s254, %s255
    %s257 = ssub.s32 %s22, %s36
    %s258 = sor.u32 %s256, %s257
    %p259 = scmp.eq.s32.totalorder %s258, 0
    %s261 = sadd.s32 %s260, 1
    %s262 = scalar_select %p259, %s260, %s261
    %p265 = pneg %p259
    %p266 = scmp.eq.s32.totalorder %s14, 1
    %p267 = por %p265, %p266
    %p268 = scmp.ne.s32.totalorder %s260, %s263
    %p269 = scmp.eq.s32.totalorder %s14, 0
    %p270 = por %p268, %p269
    %p271 = scmp.ne.s32.totalorder %s260, %s263
    %p272 = scmp.eq.s32.totalorder %s19, 1
    %p273 = por %p271, %p272
    %p274 = scmp.ne.s32.totalorder %s263, %s264
    %p275 = scmp.eq.s32.totalorder %s19, 0
    %p276 = por %p274, %p275
    %p277 = scmp.ne.s32.totalorder %s263, %s264
    %p278 = scmp.eq.s32.totalorder %s20, 1
    %p279 = por %p277, %p278
    %p281 = scmp.ne.s32.totalorder %s264, %s280
    %p282 = scmp.eq.s32.totalorder %s20, 0
    %p283 = por %p281, %p282
    %p284 = scmp.le.s32.totalorder 1, %s14
    %p285 = scmp.lt.s32.totalorder %s14, 3
    %p286 = pnand %p284, %p285
    %p287 = pneg %p286
    // Predicated region
    $region9: #{multi_scale_gau_retention.4} parent=5 // pred_check
      _
    $region10: #{multi_scale_gau_retention.4} parent=5 // pred_check_branch
      %289 = sbr.rel (%p286) target = $region12
    $region11: #{multi_scale_gau_retention.4} parent=5 // pred_region
      %s290 = ssub.s32 %s14, 1
      // Predicated region
      $region13: #{multi_scale_gau_retention.4} parent=11 // pred_check
        %p291 = pneg %p147
      $region14: #{multi_scale_gau_retention.4} parent=11 // pred_check_branch
        %293 = sbr.rel (%p291) target = $region16
      $region15: #{multi_scale_gau_retention.4} parent=11 // pred_region
        %s294 = smul.u32 2, %s25
        %s295 = smul.u32 2, %s26
        %p296 = scmp.lt.s32.totalorder %s294, 1
        %s297 = scalar_select %p296, %s294, 1
        %p298 = scmp.lt.s32.totalorder %s295, 1
        %s299 = scalar_select %p298, %s295, 1
        %s300 = smul.addr %s297, 2
        %s301 = sadd.s32 %s299, %s300
        %s302 = smul.addr %s301, 8
        %s303 = scalar_lea.vmem %s3, %s302
        %s304 = smul.u32 2, %s25
        %s305 = smul.u32 2, %s26
      $region16: #{multi_scale_gau_retention.4} parent=11 // pred_fallthru
        _
      // Predicated region
      $region17: #{multi_scale_gau_retention.4} parent=11 // pred_check
        %p306 = pneg %p173
      $region18: #{multi_scale_gau_retention.4} parent=11 // pred_check_branch
        %308 = sbr.rel (%p306) target = $region20
      $region19: #{multi_scale_gau_retention.4} parent=11 // pred_region
        %p309 = scmp.lt.s32.totalorder %s25, 0
        %s310 = scalar_select %p309, %s25, 0
        %s311 = smul.addr %s310, 8
        %s312 = scalar_lea.vmem %s4, %s311
      $region20: #{multi_scale_gau_retention.4} parent=11 // pred_fallthru
        _
      // Predicated region
      $region21: #{multi_scale_gau_retention.4} parent=11 // pred_check
        %p313 = pneg %p199
      $region22: #{multi_scale_gau_retention.4} parent=11 // pred_check_branch
        %315 = sbr.rel (%p313) target = $region24
      $region23: #{multi_scale_gau_retention.4} parent=11 // pred_region
        %p316 = scmp.lt.s32.totalorder %s25, 0
        %s317 = scalar_select %p316, %s25, 0
        %s318 = smul.addr %s317, 8
        %s319 = scalar_lea.vmem %s5, %s318
      $region24: #{multi_scale_gau_retention.4} parent=11 // pred_fallthru
        _
      // Predicated region
      $region25: #{multi_scale_gau_retention.4} parent=11 // pred_check
        %p320 = pneg %p220
      $region26: #{multi_scale_gau_retention.4} parent=11 // pred_check_branch
        %322 = sbr.rel (%p320) target = $region28
      $region27: #{multi_scale_gau_retention.4} parent=11 // pred_region
        _
      $region28: #{multi_scale_gau_retention.4} parent=11 // pred_fallthru
        _
      // Predicated region
      $region29: #{multi_scale_gau_retention.4} parent=11 // pred_check
        %p323 = pneg %p246
      $region30: #{multi_scale_gau_retention.4} parent=11 // pred_check_branch
        %325 = sbr.rel (%p323) target = $region32
      $region31: #{multi_scale_gau_retention.4} parent=11 // pred_region
        %p326 = scmp.lt.s32.totalorder %s25, 0
        %s327 = scalar_select %p326, %s25, 0
        %s328 = scalar_lea.vmem %s7, %s327
      $region32: #{multi_scale_gau_retention.4} parent=11 // pred_fallthru
        _
    $region12: #{multi_scale_gau_retention.4} parent=5 // pred_fallthru
      _
    %p329 = scmp.lt.s32.totalorder %s14, 2
    // Predicated region
    $region33: #{multi_scale_gau_retention.4} parent=5 // pred_check
      %p330 = pneg %p329
    $region34: #{multi_scale_gau_retention.4} parent=5 // pred_check_branch
      %332 = sbr.rel (%p330) target = $region36
    $region35: #{multi_scale_gau_retention.4} parent=5 // pred_region
      // Predicated region
      $region37: #{multi_scale_gau_retention.4} parent=35 // pred_check
        %p333 = pneg %p57
      $region38: #{multi_scale_gau_retention.4} parent=35 // pred_check_branch
        %335 = sbr.rel (%p333) target = $region40
      $region39: #{multi_scale_gau_retention.4} parent=35 // pred_region
        %s336 = smul.u32 2, %s23
        %p337 = scmp.lt.s32.totalorder %s21, 1
        %s338 = scalar_select %p337, %s21, 1
        %p339 = scmp.lt.s32.totalorder %s336, 1
        %s340 = scalar_select %p339, %s336, 1
        %p341 = scmp.lt.s32.totalorder %s22, 0
        %s342 = scalar_select %p341, %s22, 0
        %s343 = sadd.s32 %s342, %s340
        %s344 = smul.addr %s338, 2
        %s345 = sadd.s32 %s343, %s344
        %s346 = smul.addr %s345, 8
        %s347 = scalar_lea.vmem %s0, %s346
        %s348 = smul.u32 2, %s23
      $region40: #{multi_scale_gau_retention.4} parent=35 // pred_fallthru
        _
      // Predicated region
      $region41: #{multi_scale_gau_retention.4} parent=35 // pred_check
        %p349 = pneg %p85
      $region42: #{multi_scale_gau_retention.4} parent=35 // pred_check_branch
        %351 = sbr.rel (%p349) target = $region44
      $region43: #{multi_scale_gau_retention.4} parent=35 // pred_region
        %p352 = scmp.lt.s32.totalorder %s21, 1
        %s353 = scalar_select %p352, %s21, 1
        %p354 = scmp.lt.s32.totalorder %s22, 0
        %s355 = scalar_select %p354, %s22, 0
        %s356 = smul.addr %s353, 2
        %s357 = sadd.s32 %s355, %s356
        %s358 = smul.addr %s357, 8
        %s359 = scalar_lea.vmem %s1, %s358
      $region44: #{multi_scale_gau_retention.4} parent=35 // pred_fallthru
        _
      // Predicated region
      $region45: #{multi_scale_gau_retention.4} parent=35 // pred_check
        %p360 = pneg %p113
      $region46: #{multi_scale_gau_retention.4} parent=35 // pred_check_branch
        %362 = sbr.rel (%p360) target = $region48
      $region47: #{multi_scale_gau_retention.4} parent=35 // pred_region
        %p363 = scmp.lt.s32.totalorder %s21, 1
        %s364 = scalar_select %p363, %s21, 1
        %p365 = scmp.lt.s32.totalorder %s22, 0
        %s366 = scalar_select %p365, %s22, 0
        %s367 = smul.addr %s364, 2
        %s368 = sadd.s32 %s366, %s367
        %s369 = smul.addr %s368, 8
        %s370 = scalar_lea.vmem %s2, %s369
      $region48: #{multi_scale_gau_retention.4} parent=35 // pred_fallthru
        _
    $region36: #{multi_scale_gau_retention.4} parent=5 // pred_fallthru
      _
    %p371 = scmp.le.s32.totalorder 1, %s14
    %p372 = scmp.lt.s32.totalorder %s14, 3
    %p373 = pnand %p371, %p372
    %p374 = pneg %p373
    // Predicated region
    $region49: #{multi_scale_gau_retention.4} parent=5 // pred_check
      _
    $region50: #{multi_scale_gau_retention.4} parent=5 // pred_check_branch
      %376 = sbr.rel (%p373) target = $region52
    $region51: #{multi_scale_gau_retention.4} parent=5 // pred_region
      %s377 = ssub.s32 %s14, 1
      %s378 = smul.u32 2, %s26
      %p379 = scmp.lt.s32.totalorder %s24, 1
      %s380 = scalar_select %p379, %s24, 1
      %p381 = scmp.lt.s32.totalorder %s378, 1
      %s382 = scalar_select %p381, %s378, 1
      %p383 = scmp.lt.s32.totalorder %s25, 0
      %s384 = scalar_select %p383, %s25, 0
      %s385 = sadd.s32 %s384, %s382
      %s386 = smul.addr %s380, 2
      %s387 = sadd.s32 %s385, %s386
      %s388 = smul.addr %s387, 8
      %s389 = scalar_lea.vmem %s0, %s388
      %p390 = pneg %p63
      %p391 = pneg %p60
      %p392 = scmp.lt.s32.totalorder %s24, 1
      %s393 = scalar_select %p392, %s24, 1
      %p394 = scmp.lt.s32.totalorder %s25, 0
      %s395 = scalar_select %p394, %s25, 0
      %s396 = smul.addr %s393, 2
      %s397 = sadd.s32 %s395, %s396
      %s398 = smul.addr %s397, 8
      %s399 = scalar_lea.vmem %s1, %s398
      %p400 = pneg %p91
      %p401 = pneg %p88
      %p402 = scmp.lt.s32.totalorder %s24, 1
      %s403 = scalar_select %p402, %s24, 1
      %p404 = scmp.lt.s32.totalorder %s25, 0
      %s405 = scalar_select %p404, %s25, 0
      %s406 = smul.addr %s403, 2
      %s407 = sadd.s32 %s405, %s406
      %s408 = smul.addr %s407, 8
      %s409 = scalar_lea.vmem %s2, %s408
      %p410 = pneg %p119
      %p411 = pneg %p116
      %s412 = smul.u32 2, %s25
      %s413 = smul.u32 2, %s26
      %p414 = scmp.lt.s32.totalorder %s412, 1
      %s415 = scalar_select %p414, %s412, 1
      %p416 = scmp.lt.s32.totalorder %s413, 1
      %s417 = scalar_select %p416, %s413, 1
      %s418 = smul.addr %s415, 2
      %s419 = sadd.s32 %s417, %s418
      %s420 = smul.addr %s419, 8
      %s421 = scalar_lea.vmem %s3, %s420
      %p422 = pneg %p147
      %p423 = pneg %p144
      %p424 = scmp.lt.s32.totalorder %s25, 0
      %s425 = scalar_select %p424, %s25, 0
      %s426 = smul.addr %s425, 8
      %s427 = scalar_lea.vmem %s4, %s426
      %p428 = pneg %p173
      %p429 = pneg %p170
      %p430 = scmp.lt.s32.totalorder %s25, 0
      %s431 = scalar_select %p430, %s25, 0
      %s432 = smul.addr %s431, 8
      %s433 = scalar_lea.vmem %s5, %s432
      %p434 = pneg %p199
      %p435 = pneg %p196
      %p436 = pneg %p220
      %p437 = pneg %p217
      %p438 = scmp.lt.s32.totalorder %s25, 0
      %s439 = scalar_select %p438, %s25, 0
      %s440 = scalar_lea.vmem %s7, %s439
      %p441 = pneg %p246
      %p442 = pneg %p243
      %p443 = pneg %p276
      %p444 = pneg %p273
      %s445 = smul.u32 2, %s26
      %p446 = scmp.lt.s32.totalorder %s24, 1
      %s447 = scalar_select %p446, %s24, 1
      %p448 = scmp.lt.s32.totalorder %s445, 1
      %s449 = scalar_select %p448, %s445, 1
      %p450 = scmp.lt.s32.totalorder %s25, 0
      %s451 = scalar_select %p450, %s25, 0
      %s452 = sadd.s32 %s451, %s449
      %s453 = smul.addr %s447, 2
      %s454 = sadd.s32 %s452, %s453
      %s455 = smul.addr %s454, 8
      %s456 = scalar_lea.vmem %s8, %s455
      %s457 = smul.u32 2, %s26
      %p458 = scmp.lt.s32.totalorder %s24, 1
      %s459 = scalar_select %p458, %s24, 1
      %p460 = scmp.lt.s32.totalorder %s457, 1
      %s461 = scalar_select %p460, %s457, 1
      %p462 = scmp.lt.s32.totalorder %s25, 0
      %s463 = scalar_select %p462, %s25, 0
      %s464 = sadd.s32 %s463, %s461
      %s465 = smul.addr %s459, 2
      %s466 = sadd.s32 %s464, %s465
      %s467 = smul.addr %s466, 8
      %s468 = scalar_lea.vmem %s0, %s467
      %s469 = smul.u32 2, %s26
      %p470 = scmp.lt.s32.totalorder %s24, 1
      %s471 = scalar_select %p470, %s24, 1
      %p472 = scmp.lt.s32.totalorder %s25, 0
      %s473 = scalar_select %p472, %s25, 0
      %s474 = smul.addr %s471, 2
      %s475 = sadd.s32 %s473, %s474
      %s476 = smul.addr %s475, 8
      %s477 = scalar_lea.vmem %s1, %s476
      %p478 = scmp.lt.s32.totalorder %s24, 1
      %s479 = scalar_select %p478, %s24, 1
      %p480 = scmp.lt.s32.totalorder %s25, 0
      %s481 = scalar_select %p480, %s25, 0
      %s482 = smul.addr %s479, 2
      %s483 = sadd.s32 %s481, %s482
      %s484 = smul.addr %s483, 8
      %s485 = scalar_lea.vmem %s2, %s484
      %s486 = smul.u32 2, %s25
      %s487 = smul.u32 2, %s26
      %p488 = scmp.lt.s32.totalorder %s486, 1
      %s489 = scalar_select %p488, %s486, 1
      %p490 = scmp.lt.s32.totalorder %s487, 1
      %s491 = scalar_select %p490, %s487, 1
      %s492 = smul.addr %s489, 2
      %s493 = sadd.s32 %s491, %s492
      %s494 = smul.addr %s493, 8
      %s495 = scalar_lea.vmem %s3, %s494
      %s496 = smul.u32 2, %s25
      %s497 = smul.u32 2, %s26
      %p498 = scmp.lt.s32.totalorder %s25, 0
      %s499 = scalar_select %p498, %s25, 0
      %s500 = smul.addr %s499, 8
      %s501 = scalar_lea.vmem %s4, %s500
      %p502 = scmp.lt.s32.totalorder %s25, 0
      %s503 = scalar_select %p502, %s25, 0
      %s504 = smul.addr %s503, 8
      %s505 = scalar_lea.vmem %s5, %s504
      %p506 = scmp.lt.s32.totalorder %s25, 0
      %s507 = scalar_select %p506, %s25, 0
      %s508 = scalar_lea.vmem %s7, %s507
      %s509 = smul.u32 2, %s26
      %p510 = scmp.lt.s32.totalorder %s24, 1
      %s511 = scalar_select %p510, %s24, 1
      %p512 = scmp.lt.s32.totalorder %s509, 1
      %s513 = scalar_select %p512, %s509, 1
      %p514 = scmp.lt.s32.totalorder %s25, 0
      %s515 = scalar_select %p514, %s25, 0
      %s516 = sadd.s32 %s515, %s513
      %s517 = smul.addr %s511, 2
      %s518 = sadd.s32 %s516, %s517
      %s519 = smul.addr %s518, 8
      %s520 = scalar_lea.vmem %s8, %s519
      %s521 = smul.u32 2, %s26
      %s522 = smul.u32 %s26, 16
      %s523 = scalar_lea.vmem %s501, %s522
      %v524 = vld [vmem:[%s523] sm:$0xff]
      %v525 = vld [vmem:[%s523 + $0x8] sm:$0xff]
      %s526 = scalar_lea.vmem %s505, %s522
      %v527 = vld [vmem:[%s526] sm:$0xff]
      %v528 = vld [vmem:[%s526 + $0x8] sm:$0xff]
      %v529 = vld [vmem:[%s501] sm:$0xff]
      %v530 = vld [vmem:[%s501 + $0x8] sm:$0xff]
      %v531 = vld [vmem:[%s505] sm:$0xff]
      %v532 = vld [vmem:[%s505 + $0x8] sm:$0xff]
      %v533 = vld [vmem:[%s468] sm:$0xff]
      %v534 = vld [vmem:[%s468 + $0x8] sm:$0xff]
      %v535 = vld [vmem:[%s477] sm:$0xff]
      %v536 = vld [vmem:[%s477 + $0x8] sm:$0xff]
      %v537 = vld [vmem:[%s485] sm:$0xff]
      %v538 = vld [vmem:[%s485 + $0x8] sm:$0xff]
      %v539 = vld [vmem:[%s6] sm:$0xff]
      %v540 = vld [vmem:[%s6 + $0x8] sm:$0xff]
      %v541 = vld [vmem:[%s6 + $0x10] sm:$0xff]
      %v542 = vld [vmem:[%s6 + $0x18] sm:$0xff]
      %v543 = vld [vmem:[%s6 + $0x20] sm:$0xff]
      %v544 = vld [vmem:[%s6 + $0x28] sm:$0xff]
      %v545 = vld [vmem:[%s6 + $0x30] sm:$0xff]
      %v546 = vld [vmem:[%s6 + $0x38] sm:$0xff]
      %vm547 = vcmask 523264
      %v549 = vsel %vm547, %v533, 0
      %v552 = vsel %vm547, %v534, 0
      %554 = vmatpush.msra.mxu0 0.0
      %555 = vmatpush.msra.mxu0 0.0
      %556 = vmatpush.msra.mxu0 0.0
      %557 = vmatpush.msra.mxu0 0.0
      %558 = vmatpush.msra.mxu0 0.0
      %559 = vmatpush.msra.mxu0 0.0
      %560 = vmatpush.msra.mxu0 0.0
      %561 = vmatpush.msra.mxu0 0.0
      %562 = vmatpush.msra.mxu0 %v546
      %563 = vmatpush.msra.mxu0 %v545
      %564 = vmatpush.msra.mxu0 %v544
      %565 = vmatpush.msra.mxu0 %v543
      %566 = vmatpush.msra.mxu0 %v542
      %567 = vmatpush.msra.mxu0 %v541
      %568 = vmatpush.msra.mxu0 %v540
      %569 = vmatpush.msra.mxu0 %v539
      %570 = vmatmul.f32.gmra.mxu0 %v549
      %v571 = vpop.f32.mrf.mxu0
      %v572 = vadd.f32 0.0, %v571
      %573 = vmatmul.f32.gmra.mxu0 %v552
      %v574 = vpop.f32.mrf.mxu0
      %v575 = vadd.f32 0.0, %v574
      %576 = vdwg.mxu0
      %v578 = vsel %vm547, %v535, 0
      %v581 = vsel %vm547, %v536, 0
      %583 = vmatpush.msra.mxu0 0.0
      %584 = vmatpush.msra.mxu0 0.0
      %585 = vmatpush.msra.mxu0 0.0
      %586 = vmatpush.msra.mxu0 0.0
      %587 = vmatpush.msra.mxu0 0.0
      %588 = vmatpush.msra.mxu0 0.0
      %589 = vmatpush.msra.mxu0 0.0
      %590 = vmatpush.msra.mxu0 0.0
      %591 = vmatpush.msra.mxu0 %v546
      %592 = vmatpush.msra.mxu0 %v545
      %593 = vmatpush.msra.mxu0 %v544
      %594 = vmatpush.msra.mxu0 %v543
      %595 = vmatpush.msra.mxu0 %v542
      %596 = vmatpush.msra.mxu0 %v541
      %597 = vmatpush.msra.mxu0 %v540
      %598 = vmatpush.msra.mxu0 %v539
      %599 = vmatmul.f32.gmra.mxu0 %v578
      %v600 = vpop.f32.mrf.mxu0
      %v601 = vadd.f32 0.0, %v600
      %602 = vmatmul.f32.gmra.mxu0 %v581
      %v603 = vpop.f32.mrf.mxu0
      %v604 = vadd.f32 0.0, %v603
      %605 = vdwg.mxu0
      %v606 = vmul.f32 %v533, %v527
      %v607 = vmul.f32 %v534, %v528
      %v608 = vmul.f32 %v572, %v524
      %v609 = vmul.f32 %v575, %v525
      %v610 = vadd.f32 %v606, %v608
      %v611 = vadd.f32 %v607, %v609
      %v612 = vmul.f32 %v535, %v531
      %v613 = vmul.f32 %v536, %v532
      %v614 = vmul.f32 %v601, %v529
      %v615 = vmul.f32 %v604, %v530
      %v616 = vadd.f32 %v612, %v614
      %v617 = vadd.f32 %v613, %v615
      %vm618 = vcmask 261120
      %v620 = vsel %vm618, %v610, 0
      %v623 = vsel %vm618, %v611, 0
      %v626 = vsel %vm618, %v616, 0
      %v629 = vsel %vm618, %v617, 0
      %631 = vmatpush.xpose.msra.mxu0 0.0
      %632 = vmatpush.xpose.msra.mxu0 0.0
      %633 = vmatpush.xpose.msra.mxu0 0.0
      %634 = vmatpush.xpose.msra.mxu0 0.0
      %635 = vmatpush.xpose.msra.mxu0 0.0
      %636 = vmatpush.xpose.msra.mxu0 0.0
      %637 = vmatpush.xpose.msra.mxu0 0.0
      %638 = vmatpush.xpose.msra.mxu0 0.0
      %639 = vmatpush.xpose.msra.mxu0 0.0
      %640 = vmatpush.xpose.msra.mxu0 0.0
      %641 = vmatpush.xpose.msra.mxu0 0.0
      %642 = vmatpush.xpose.msra.mxu0 0.0
      %643 = vmatpush.xpose.msra.mxu0 0.0
      %644 = vmatpush.xpose.msra.mxu0 0.0
      %645 = vmatpush.xpose.msra.mxu0 %v629
      %646 = vmatpush.xpose.msra.mxu0 %v626
      %647 = vmatmul.f32.gmra.mxu0 %v620
      %v648 = vpop.f32.mrf.mxu0
      %v649 = vadd.f32 0.0, %v648
      %650 = vmatmul.f32.gmra.mxu0 %v623
      %v651 = vpop.f32.mrf.mxu0
      %v652 = vadd.f32 0.0, %v651
      %653 = vdwg.mxu0
      %v654 = vld [vmem:[%s495] sm:$0xff]
      %v655 = vld [vmem:[%s495 + $0x8] sm:$0xff]
      %v656 = vmul.f32 %v649, %v654
      %v657 = vmul.f32 %v652, %v655
      %v658 = vand.u32 2147483647, %v656
      %v659 = vand.u32 2147483647, %v657
      %vm660 = vcmask 130048
      %v661 = vsel %vm660, %v658, 0.0
      %662 = vadd.xlane.f32.xlu0 %v661
      %v663 = vpop.xlane.xlu0 %662
      %v664 = vsel %vm660, %v659, 0.0
      %665 = vadd.xlane.f32.xlu0 %v664
      %v666 = vpop.xlane.xlu0 %665
      %v667 = vmax.f32 %v663, 1.0
      %v668 = vmax.f32 %v666, 1.0
      %v669 = vmin.f32 %v667, 50000.0
      %v670 = vmin.f32 %v668, 50000.0
      %v671 = vrcp.pop %v669
      %v672 = vrcp.pop %v670
      %v673 = vmul.f32 %v656, %v671
      %v674 = vmul.f32 %v657, %v672
      %v676 = vsel %vm660, %v673, 0
      %v679 = vsel %vm660, %v674, 0
      %681 = vmatpush.msra.mxu0 0.0
      %682 = vmatpush.msra.mxu0 0.0
      %683 = vmatpush.msra.mxu0 0.0
      %684 = vmatpush.msra.mxu0 0.0
      %685 = vmatpush.msra.mxu0 0.0
      %686 = vmatpush.msra.mxu0 0.0
      %687 = vmatpush.msra.mxu0 0.0
      %688 = vmatpush.msra.mxu0 0.0
      %689 = vmatpush.msra.mxu0 0.0
      %690 = vmatpush.msra.mxu0 0.0
      %691 = vmatpush.msra.mxu0 0.0
      %692 = vmatpush.msra.mxu0 0.0
      %693 = vmatpush.msra.mxu0 0.0
      %694 = vmatpush.msra.mxu0 0.0
      %695 = vmatpush.msra.mxu0 %v538
      %696 = vmatpush.msra.mxu0 %v537
      %697 = vmatmul.f32.gmra.mxu0 %v676
      %v698 = vpop.f32.mrf.mxu0
      %v699 = vadd.f32 0.0, %v698
      %700 = vmatmul.f32.gmra.mxu0 %v679
      %v701 = vpop.f32.mrf.mxu0
      %v702 = vadd.f32 0.0, %v701
      %703 = vdwg.mxu0
      %v704 = vmul.f32 %v699, %v699
      %v705 = vmul.f32 %v702, %v702
      %v706 = vsel %vm547, %v704, 0.0
      %707 = vadd.xlane.f32.xlu0 %v706
      %v708 = vpop.xlane.xlu0 %707
      %v709 = vsel %vm547, %v705, 0.0
      %710 = vadd.xlane.f32.xlu0 %v709
      %v711 = vpop.xlane.xlu0 %710
      %v712 = vrcp.pop 64.0
      %v713 = vmul.f32 64.0, %v712
      %v714 = vsub.f32 1.0, %v713
      %v715 = vmul.f32 %v712, %v714
      %v716 = vadd.f32 %v712, %v715
      %vm717 = vweird.f32 %v712
      %v718 = vsel %vm717, %v712, %v716
      %v719 = vmul.f32 %v708, %v718
      %v720 = vmul.f32 %v711, %v718
      %v721 = vadd.f32 %v719, 1e-06
      %v722 = vadd.f32 %v720, 1e-06
      %v723 = vrsqrt.pop %v721
      %v724 = vmul.f32 %v723, %v721
      %v725 = vmul.f32 %v724, %v723
      %v726 = vmul.f32 0.5, %v725
      %v727 = vsub.f32 1.5, %v726
      %v728 = vmul.f32 %v723, %v727
      %vm729 = vweird.f32 %v721
      %vm730 = vweird.f32 %v723
      %vm731 = vmor %vm729, %vm730
      %v732 = vsel %vm731, %v723, %v728
      %v733 = vrsqrt.pop %v722
      %v734 = vmul.f32 %v733, %v722
      %v735 = vmul.f32 %v734, %v733
      %v736 = vmul.f32 0.5, %v735
      %v737 = vsub.f32 1.5, %v736
      %v738 = vmul.f32 %v733, %v737
      %vm739 = vweird.f32 %v722
      %vm740 = vweird.f32 %v733
      %vm741 = vmor %vm739, %vm740
      %v742 = vsel %vm741, %v733, %v738
      %v743 = vmul.f32 %v699, %v732
      %v744 = vmul.f32 %v702, %v742
      %745 = vrot.lane.b32.xlu0 %v610, 96
      %v746 = vpop.permute.xlu0 %745
      %747 = vrot.lane.b32.xlu0 %v611, 96
      %v748 = vpop.permute.xlu0 %747
      %749 = vrot.lane.b32.xlu0 %v616, 96
      %v750 = vpop.permute.xlu0 %749
      %751 = vrot.lane.b32.xlu0 %v617, 96
      %v752 = vpop.permute.xlu0 %751
      %v753 = vsel %vm618, %v746, 0
      %v755 = vsel %vm618, %v748, 0
      %v757 = vsel %vm618, %v750, 0
      %v759 = vsel %vm618, %v752, 0
      %761 = vmatpush.xpose.msra.mxu0 0.0
      %762 = vmatpush.xpose.msra.mxu0 0.0
      %763 = vmatpush.xpose.msra.mxu0 0.0
      %764 = vmatpush.xpose.msra.mxu0 0.0
      %765 = vmatpush.xpose.msra.mxu0 0.0
      %766 = vmatpush.xpose.msra.mxu0 0.0
      %767 = vmatpush.xpose.msra.mxu0 0.0
      %768 = vmatpush.xpose.msra.mxu0 0.0
      %769 = vmatpush.xpose.msra.mxu0 0.0
      %770 = vmatpush.xpose.msra.mxu0 0.0
      %771 = vmatpush.xpose.msra.mxu0 0.0
      %772 = vmatpush.xpose.msra.mxu0 0.0
      %773 = vmatpush.xpose.msra.mxu0 0.0
      %774 = vmatpush.xpose.msra.mxu0 0.0
      %775 = vmatpush.xpose.msra.mxu0 %v759
      %776 = vmatpush.xpose.msra.mxu0 %v757
      %777 = vmatmul.f32.gmra.mxu0 %v753
      %v778 = vpop.f32.mrf.mxu0
      %v779 = vadd.f32 0.0, %v778
      %780 = vmatmul.f32.gmra.mxu0 %v755
      %v781 = vpop.f32.mrf.mxu0
      %v782 = vadd.f32 0.0, %v781
      %783 = vdwg.mxu0
      %s784 = scalar_lea.vmem %s495, 16
      %v785 = vld [vmem:[%s784] sm:$0xff]
      %v786 = vld [vmem:[%s784 + $0x8] sm:$0xff]
      %v787 = vmul.f32 %v779, %v785
      %v788 = vmul.f32 %v782, %v786
      %v789 = vand.u32 2147483647, %v787
      %v790 = vand.u32 2147483647, %v788
      %v791 = vsel %vm660, %v789, 0.0
      %792 = vadd.xlane.f32.xlu0 %v791
      %v793 = vpop.xlane.xlu0 %792
      %v794 = vsel %vm660, %v790, 0.0
      %795 = vadd.xlane.f32.xlu0 %v794
      %v796 = vpop.xlane.xlu0 %795
      %v797 = vmax.f32 %v793, 1.0
      %v798 = vmax.f32 %v796, 1.0
      %v799 = vmin.f32 %v797, 50000.0
      %v800 = vmin.f32 %v798, 50000.0
      %v801 = vrcp.pop %v799
      %v802 = vrcp.pop %v800
      %v803 = vmul.f32 %v787, %v801
      %v804 = vmul.f32 %v788, %v802
      %807 = vrot.lane.b32.xlu0 %v537, 64
      %v808 = vpop.permute.xlu0 %807
      %809 = vrot.lane.b32.xlu0 %v538, 64
      %v810 = vpop.permute.xlu0 %809
      %v814 = vsel %vm660, %v803, 0
      %v817 = vsel %vm660, %v804, 0
      %819 = vmatpush.msra.mxu0 0.0
      %820 = vmatpush.msra.mxu0 0.0
      %821 = vmatpush.msra.mxu0 0.0
      %822 = vmatpush.msra.mxu0 0.0
      %823 = vmatpush.msra.mxu0 0.0
      %824 = vmatpush.msra.mxu0 0.0
      %825 = vmatpush.msra.mxu0 0.0
      %826 = vmatpush.msra.mxu0 0.0
      %827 = vmatpush.msra.mxu0 0.0
      %828 = vmatpush.msra.mxu0 0.0
      %829 = vmatpush.msra.mxu0 0.0
      %830 = vmatpush.msra.mxu0 0.0
      %831 = vmatpush.msra.mxu0 0.0
      %832 = vmatpush.msra.mxu0 0.0
      %833 = vmatpush.msra.mxu0 %v810
      %834 = vmatpush.msra.mxu0 %v808
      %835 = vmatmul.f32.gmra.mxu0 %v814
      %v836 = vpop.f32.mrf.mxu0
      %v837 = vadd.f32 0.0, %v836
      %838 = vmatmul.f32.gmra.mxu0 %v817
      %v839 = vpop.f32.mrf.mxu0
      %v840 = vadd.f32 0.0, %v839
      %841 = vdwg.mxu0
      %v842 = vmul.f32 %v837, %v837
      %v843 = vmul.f32 %v840, %v840
      %v844 = vsel %vm547, %v842, 0.0
      %845 = vadd.xlane.f32.xlu0 %v844
      %v846 = vpop.xlane.xlu0 %845
      %v847 = vsel %vm547, %v843, 0.0
      %848 = vadd.xlane.f32.xlu0 %v847
      %v849 = vpop.xlane.xlu0 %848
      %v850 = vmul.f32 %v846, %v718
      %v851 = vmul.f32 %v849, %v718
      %v852 = vadd.f32 %v850, 1e-06
      %v853 = vadd.f32 %v851, 1e-06
      %v854 = vrsqrt.pop %v852
      %v855 = vmul.f32 %v854, %v852
      %v856 = vmul.f32 %v855, %v854
      %v857 = vmul.f32 0.5, %v856
      %v858 = vsub.f32 1.5, %v857
      %v859 = vmul.f32 %v854, %v858
      %vm860 = vweird.f32 %v852
      %vm861 = vweird.f32 %v854
      %vm862 = vmor %vm860, %vm861
      %v863 = vsel %vm862, %v854, %v859
      %v864 = vrsqrt.pop %v853
      %v865 = vmul.f32 %v864, %v853
      %v866 = vmul.f32 %v865, %v864
      %v867 = vmul.f32 0.5, %v866
      %v868 = vsub.f32 1.5, %v867
      %v869 = vmul.f32 %v864, %v868
      %vm870 = vweird.f32 %v853
      %vm871 = vweird.f32 %v864
      %vm872 = vmor %vm870, %vm871
      %v873 = vsel %vm872, %v864, %v869
      %v874 = vmul.f32 %v837, %v863
      %v875 = vmul.f32 %v840, %v873
      %878 = vrot.lane.b32.xlu0 %v874, 64
      %v879 = vpop.permute.xlu0 %878
      %880 = vrot.lane.b32.xlu0 %v875, 64
      %v881 = vpop.permute.xlu0 %880
      %v884 = vsel %vm547, %v743, %v879
      %v885 = vsel %vm547, %v744, %v881
      %v886 = vld [vmem:[%s508] sm:$0x1]
      %v888 = vperm.slane %v886, 0
      %v890 = vmul.f32 %v884, %v888
      %v891 = vmul.f32 %v885, %v888
      %892 = vst [vmem:[%s520] sm:$0xff] %v890
      %893 = vst [vmem:[%s520 + $0x8] sm:$0xff] %v891
      %s894 = smul.u32 2, %s26
      %p895 = scmp.lt.s32.totalorder %s24, 1
      %s896 = scalar_select %p895, %s24, 1
      %p897 = scmp.lt.s32.totalorder %s894, 1
      %s898 = scalar_select %p897, %s894, 1
      %p899 = scmp.lt.s32.totalorder %s25, 0
      %s900 = scalar_select %p899, %s25, 0
      %s901 = sadd.s32 %s900, %s898
      %s902 = smul.addr %s896, 2
      %s903 = sadd.s32 %s901, %s902
      %s904 = smul.addr %s903, 8
      %s905 = scalar_lea.vmem %s8, %s904
      // Predicated region
      $region53: #{multi_scale_gau_retention.4} parent=51 // pred_check
        %p906 = pneg %p273
      $region54: #{multi_scale_gau_retention.4} parent=51 // pred_check_branch
        %908 = sbr.rel (%p906) target = $region56
      $region55: #{multi_scale_gau_retention.4} parent=51 // pred_region
        %s909 = smul.u32 2, %s26
      $region56: #{multi_scale_gau_retention.4} parent=51 // pred_fallthru
        _
    $region52: #{multi_scale_gau_retention.4} parent=5 // pred_fallthru
      _
    %p910 = scmp.le.s32.totalorder 2, %s14
    // Predicated region
    $region57: #{multi_scale_gau_retention.4} parent=5 // pred_check
      %p911 = pneg %p910
    $region58: #{multi_scale_gau_retention.4} parent=5 // pred_check_branch
      %913 = sbr.rel (%p911) target = $region60
    $region59: #{multi_scale_gau_retention.4} parent=5 // pred_region
      %s914 = ssub.s32 %s14, 2
      // Predicated region
      $region61: #{multi_scale_gau_retention.4} parent=59 // pred_check
        %p915 = pneg %p279
      $region62: #{multi_scale_gau_retention.4} parent=59 // pred_check_branch
        %917 = sbr.rel (%p915) target = $region64
      $region63: #{multi_scale_gau_retention.4} parent=59 // pred_region
        %s918 = smul.u32 2, %s29
        %p919 = scmp.lt.s32.totalorder %s27, 1
        %s920 = scalar_select %p919, %s27, 1
        %p921 = scmp.lt.s32.totalorder %s918, 1
        %s922 = scalar_select %p921, %s918, 1
        %p923 = scmp.lt.s32.totalorder %s28, 0
        %s924 = scalar_select %p923, %s28, 0
        %s925 = sadd.s32 %s924, %s922
        %s926 = smul.addr %s920, 2
        %s927 = sadd.s32 %s925, %s926
        %s928 = smul.addr %s927, 8
        %s929 = scalar_lea.vmem %s8, %s928
      $region64: #{multi_scale_gau_retention.4} parent=59 // pred_fallthru
        _
    $region60: #{multi_scale_gau_retention.4} parent=5 // pred_fallthru
      _
  $region6: #{multi_scale_gau_retention.4} parent=0 // loop_footer
    %s18 = sadd.s32 1, %s14
  $region7: #{multi_scale_gau_retention.4} parent=0 // loop_footer_branch
    %13 = sbr.rel target = $region3
  $region8: #{multi_scale_gau_retention.4} parent=0 // loop_exit
    _

// kernel: multi_scale_gau_retention.3
$region0: #{multi_scale_gau_retention.3}
  #allocation0 [shape = 'u32[]', space=smem, size = 0x4, offset = 0x4, fixed_abs, tag = 'smem constant byte address 0x4 - core index']
  #allocation1 [shape = 'u32[72,128]{1,0:T(1,128)}', space=vmem, size = 0x9000, scoped, tag = 'internal scratch']
  %s0 = inlined_call_operand.hbm [shape: f32[32,64], index: 0, kind: input, shape index: {}]
  %s1 = inlined_call_operand.hbm [shape: f32[64,384], index: 1, kind: input, shape index: {}]
  %s2 = inlined_call_operand.vmem [shape: f32[1,384], index: 2, kind: input, shape index: {}]
  %s3 = inlined_call_operand.vmem [shape: f32[32,384], index: 3, kind: output, shape index: {}]
  %s4 = sld [smem:[#allocation0]]
  $region30: #{multi_scale_gau_retention.3} parent=0
    _
  %s6 = ssub.s32 1, %s4
  %s7 = scalar_select 0, %s6, %s4
  $region1: #{multi_scale_gau_retention.3} parent=0
    #allocation2 [shape = 'u8[16384]{0}', space=vmem, size = 0x4000, scoped, tag = 'input window, operand 0, single buffered']
    #allocation3 [shape = 's32[1]{0}', space=sflag, size = 0x4, scoped, tag = 'scoped memory for multi_scale_gau_retention.3']
    #allocation4 [shape = 'u8[98304]{0}', space=vmem, size = 0x18000, scoped, tag = 'input window, operand 1, single buffered']
    #allocation5 [shape = 's32[1]{0}', space=sflag, size = 0x4, scoped, tag = 'scoped memory for multi_scale_gau_retention.3']
    %8 = vsyncpa [#allocation3], 0
    %9 = vsyncpa [#allocation5], 0
    // Predicated region
    $region2: #{multi_scale_gau_retention.3} parent=1 // pred_check
      _
    $region3: #{multi_scale_gau_retention.3} parent=1 // pred_check_branch
      %11 = sbr.rel (0) target = $region5
    $region4: #{multi_scale_gau_retention.3} parent=1 // pred_region
      %13 = vsyncadd [#allocation3], 0
      %s14 = sshll.u32 %s0, 4
      %s15 = int_to_ptr.hbm [resolvable:$true] %s14
      %s16 = sshll.u32 [#allocation2], 4
      %s17 = int_to_ptr.vmem [resolvable:$true] %s16
      %22 = dma.hbm_to_vmem [thread:$0]  %s15, 512, %s17, [#allocation3], 128, 128, 8
    $region5: #{multi_scale_gau_retention.3} parent=1 // pred_fallthru
      _
    // Predicated region
    $region6: #{multi_scale_gau_retention.3} parent=1 // pred_check
      _
    $region7: #{multi_scale_gau_retention.3} parent=1 // pred_check_branch
      %24 = sbr.rel (0) target = $region9
    $region8: #{multi_scale_gau_retention.3} parent=1 // pred_region
      %26 = vsyncadd [#allocation5], 0
      %s27 = sshll.u32 %s1, 4
      %s28 = int_to_ptr.hbm [resolvable:$true] %s27
      %s29 = sshll.u32 [#allocation4], 4
      %s30 = int_to_ptr.vmem [resolvable:$true] %s29
      %35 = dma.hbm_to_vmem [thread:$0]  %s28, 3072, %s30, [#allocation5], 384, 384, 24
    $region9: #{multi_scale_gau_retention.3} parent=1 // pred_fallthru
      _
    // Predicated region
    $region10: #{multi_scale_gau_retention.3} parent=1 // pred_check
      _
    $region11: #{multi_scale_gau_retention.3} parent=1 // pred_check_branch
      %37 = sbr.rel (0) target = $region13
    $region12: #{multi_scale_gau_retention.3} parent=1 // pred_region
      _
    $region13: #{multi_scale_gau_retention.3} parent=1 // pred_fallthru
      _
    // Predicated region
    $region14: #{multi_scale_gau_retention.3} parent=1 // pred_check
      _
    $region15: #{multi_scale_gau_retention.3} parent=1 // pred_check_branch
      %39 = sbr.rel (0) target = $region17
    $region16: #{multi_scale_gau_retention.3} parent=1 // pred_region
      %41 = dma.done [#allocation3], 512
    $region17: #{multi_scale_gau_retention.3} parent=1 // pred_fallthru
      _
    // Predicated region
    $region18: #{multi_scale_gau_retention.3} parent=1 // pred_check
      _
    $region19: #{multi_scale_gau_retention.3} parent=1 // pred_check_branch
      %43 = sbr.rel (0) target = $region21
    $region20: #{multi_scale_gau_retention.3} parent=1 // pred_region
      %45 = dma.done [#allocation5], 3072
    $region21: #{multi_scale_gau_retention.3} parent=1 // pred_fallthru
      _
    %v46 = vld [vmem:[#allocation2] sm:$0xff]
    %v47 = vld [vmem:[#allocation2 + $0x8] sm:$0xff]
    %v48 = vld [vmem:[#allocation2 + $0x10] sm:$0xff]
    %v49 = vld [vmem:[#allocation2 + $0x18] sm:$0xff]
    %v50 = vld [vmem:[#allocation4] sm:$0xff]
    %v51 = vld [vmem:[#allocation4 + $0x8] sm:$0xff]
    %v52 = vld [vmem:[#allocation4 + $0x10] sm:$0xff]
    %v53 = vld [vmem:[#allocation4 + $0x18] sm:$0xff]
    %v54 = vld [vmem:[#allocation4 + $0x20] sm:$0xff]
    %v55 = vld [vmem:[#allocation4 + $0x28] sm:$0xff]
    %v56 = vld [vmem:[#allocation4 + $0x30] sm:$0xff]
    %v57 = vld [vmem:[#allocation4 + $0x38] sm:$0xff]
    %v58 = vld [vmem:[#allocation4 + $0x40] sm:$0xff]
    %v59 = vld [vmem:[#allocation4 + $0x48] sm:$0xff]
    %v60 = vld [vmem:[#allocation4 + $0x50] sm:$0xff]
    %v61 = vld [vmem:[#allocation4 + $0x58] sm:$0xff]
    %v62 = vld [vmem:[#allocation4 + $0x60] sm:$0xff]
    %v63 = vld [vmem:[#allocation4 + $0x68] sm:$0xff]
    %v64 = vld [vmem:[#allocation4 + $0x70] sm:$0xff]
    %v65 = vld [vmem:[#allocation4 + $0x78] sm:$0xff]
    %v66 = vld [vmem:[#allocation4 + $0x80] sm:$0xff]
    %v67 = vld [vmem:[#allocation4 + $0x88] sm:$0xff]
    %v68 = vld [vmem:[#allocation4 + $0x90] sm:$0xff]
    %v69 = vld [vmem:[#allocation4 + $0x98] sm:$0xff]
    %v70 = vld [vmem:[#allocation4 + $0xa0] sm:$0xff]
    %v71 = vld [vmem:[#allocation4 + $0xa8] sm:$0xff]
    %v72 = vld [vmem:[#allocation4 + $0xb0] sm:$0xff]
    %v73 = vld [vmem:[#allocation4 + $0xb8] sm:$0xff]
    %vm74 = vcmask 523264
    %v76 = vsel %vm74, %v46, 0
    %v79 = vsel %vm74, %v47, 0
    %v82 = vsel %vm74, %v48, 0
    %v85 = vsel %vm74, %v49, 0
    %87 = vmatpush.msra.mxu0 0.0
    %88 = vmatpush.msra.mxu0 0.0
    %89 = vmatpush.msra.mxu0 0.0
    %90 = vmatpush.msra.mxu0 0.0
    %91 = vmatpush.msra.mxu0 0.0
    %92 = vmatpush.msra.mxu0 0.0
    %93 = vmatpush.msra.mxu0 0.0
    %94 = vmatpush.msra.mxu0 0.0
    %95 = vmatpush.msra.mxu0 %v71
    %96 = vmatpush.msra.mxu0 %v68
    %97 = vmatpush.msra.mxu0 %v65
    %98 = vmatpush.msra.mxu0 %v62
    %99 = vmatpush.msra.mxu0 %v59
    %100 = vmatpush.msra.mxu0 %v56
    %101 = vmatpush.msra.mxu0 %v53
    %102 = vmatpush.msra.mxu0 %v50
    %103 = vmatmul.f32.gmra.mxu0 %v76
    %v104 = vpop.f32.mrf.mxu0
    %v105 = vadd.f32 0.0, %v104
    %106 = vmatmul.f32.gmra.mxu0 %v79
    %v107 = vpop.f32.mrf.mxu0
    %v108 = vadd.f32 0.0, %v107
    %109 = vmatmul.f32.gmra.mxu0 %v82
    %v110 = vpop.f32.mrf.mxu0
    %v111 = vadd.f32 0.0, %v110
    %112 = vmatmul.f32.gmra.mxu0 %v85
    %v113 = vpop.f32.mrf.mxu0
    %v114 = vadd.f32 0.0, %v113
    %115 = vdwg.mxu0
    %116 = vmatpush.msra.mxu0 0.0
    %117 = vmatpush.msra.mxu0 0.0
    %118 = vmatpush.msra.mxu0 0.0
    %119 = vmatpush.msra.mxu0 0.0
    %120 = vmatpush.msra.mxu0 0.0
    %121 = vmatpush.msra.mxu0 0.0
    %122 = vmatpush.msra.mxu0 0.0
    %123 = vmatpush.msra.mxu0 0.0
    %124 = vmatpush.msra.mxu0 %v72
    %125 = vmatpush.msra.mxu0 %v69
    %126 = vmatpush.msra.mxu0 %v66
    %127 = vmatpush.msra.mxu0 %v63
    %128 = vmatpush.msra.mxu0 %v60
    %129 = vmatpush.msra.mxu0 %v57
    %130 = vmatpush.msra.mxu0 %v54
    %131 = vmatpush.msra.mxu0 %v51
    %132 = vmatmul.f32.gmra.mxu0 %v76
    %v133 = vpop.f32.mrf.mxu0
    %v134 = vadd.f32 0.0, %v133
    %135 = vmatmul.f32.gmra.mxu0 %v79
    %v136 = vpop.f32.mrf.mxu0
    %v137 = vadd.f32 0.0, %v136
    %138 = vmatmul.f32.gmra.mxu0 %v82
    %v139 = vpop.f32.mrf.mxu0
    %v140 = vadd.f32 0.0, %v139
    %141 = vmatmul.f32.gmra.mxu0 %v85
    %v142 = vpop.f32.mrf.mxu0
    %v143 = vadd.f32 0.0, %v142
    %144 = vdwg.mxu0
    %145 = vmatpush.msra.mxu0 0.0
    %146 = vmatpush.msra.mxu0 0.0
    %147 = vmatpush.msra.mxu0 0.0
    %148 = vmatpush.msra.mxu0 0.0
    %149 = vmatpush.msra.mxu0 0.0
    %150 = vmatpush.msra.mxu0 0.0
    %151 = vmatpush.msra.mxu0 0.0
    %152 = vmatpush.msra.mxu0 0.0
    %153 = vmatpush.msra.mxu0 %v73
    %154 = vmatpush.msra.mxu0 %v70
    %155 = vmatpush.msra.mxu0 %v67
    %156 = vmatpush.msra.mxu0 %v64
    %157 = vmatpush.msra.mxu0 %v61
    %158 = vmatpush.msra.mxu0 %v58
    %159 = vmatpush.msra.mxu0 %v55
    %160 = vmatpush.msra.mxu0 %v52
    %161 = vmatmul.f32.gmra.mxu0 %v76
    %v162 = vpop.f32.mrf.mxu0
    %v163 = vadd.f32 0.0, %v162
    %164 = vmatmul.f32.gmra.mxu0 %v79
    %v165 = vpop.f32.mrf.mxu0
    %v166 = vadd.f32 0.0, %v165
    %167 = vmatmul.f32.gmra.mxu0 %v82
    %v168 = vpop.f32.mrf.mxu0
    %v169 = vadd.f32 0.0, %v168
    %170 = vmatmul.f32.gmra.mxu0 %v85
    %v171 = vpop.f32.mrf.mxu0
    %v172 = vadd.f32 0.0, %v171
    %173 = vdwg.mxu0
    %v174 = vxor.u32 %v105, 2147483648
    %v175 = vxor.u32 %v134, 2147483648
    %v176 = vxor.u32 %v163, 2147483648
    %v177 = vxor.u32 %v108, 2147483648
    %v178 = vxor.u32 %v137, 2147483648
    %v179 = vxor.u32 %v166, 2147483648
    %v180 = vxor.u32 %v111, 2147483648
    %v181 = vxor.u32 %v140, 2147483648
    %v182 = vxor.u32 %v169, 2147483648
    %v183 = vxor.u32 %v114, 2147483648
    %v184 = vxor.u32 %v143, 2147483648
    %v185 = vxor.u32 %v172, 2147483648
    %v186 = vmul.f32 %v174, 1.442695
    %v187 = vpow.pop %v186
    %v188 = vmul.f32 %v175, 1.442695
    %v189 = vpow.pop %v188
    %v190 = vmul.f32 %v176, 1.442695
    %v191 = vpow.pop %v190
    %v192 = vmul.f32 %v177, 1.442695
    %v193 = vpow.pop %v192
    %v194 = vmul.f32 %v178, 1.442695
    %v195 = vpow.pop %v194
    %v196 = vmul.f32 %v179, 1.442695
    %v197 = vpow.pop %v196
    %v198 = vmul.f32 %v180, 1.442695
    %v199 = vpow.pop %v198
    %v200 = vmul.f32 %v181, 1.442695
    %v201 = vpow.pop %v200
    %v202 = vmul.f32 %v182, 1.442695
    %v203 = vpow.pop %v202
    %v204 = vmul.f32 %v183, 1.442695
    %v205 = vpow.pop %v204
    %v206 = vmul.f32 %v184, 1.442695
    %v207 = vpow.pop %v206
    %v208 = vmul.f32 %v185, 1.442695
    %v209 = vpow.pop %v208
    %v210 = vadd.f32 %v187, 1.0
    %v211 = vadd.f32 %v189, 1.0
    %v212 = vadd.f32 %v191, 1.0
    %v213 = vadd.f32 %v193, 1.0
    %v214 = vadd.f32 %v195, 1.0
    %v215 = vadd.f32 %v197, 1.0
    %v216 = vadd.f32 %v199, 1.0
    %v217 = vadd.f32 %v201, 1.0
    %v218 = vadd.f32 %v203, 1.0
    %v219 = vadd.f32 %v205, 1.0
    %v220 = vadd.f32 %v207, 1.0
    %v221 = vadd.f32 %v209, 1.0
    %v222 = vrcp.pop %v210
    %v223 = vmul.f32 %v210, %v222
    %v224 = vsub.f32 1.0, %v223
    %v225 = vmul.f32 %v222, %v224
    %v226 = vadd.f32 %v222, %v225
    %vm227 = vweird.f32 %v210
    %vm228 = vweird.f32 %v222
    %vm229 = vmor %vm227, %vm228
    %v230 = vsel %vm229, %v222, %v226
    %v231 = vand.u32 2147483647, %v210
    %vm232 = vcmp.eq.f32.partialorder %v231, 8.507059e+37
    %v233 = vand.u32 %v210, 2147483648
    %v234 = vor.u32 1.1754944e-38, %v233
    %v235 = vsel %vm232, %v234, %v230
    %v236 = vmul.f32 1.0, %v235
    %v237 = vrcp.pop %v211
    %v238 = vmul.f32 %v211, %v237
    %v239 = vsub.f32 1.0, %v238
    %v240 = vmul.f32 %v237, %v239
    %v241 = vadd.f32 %v237, %v240
    %vm242 = vweird.f32 %v211
    %vm243 = vweird.f32 %v237
    %vm244 = vmor %vm242, %vm243
    %v245 = vsel %vm244, %v237, %v241
    %v246 = vand.u32 2147483647, %v211
    %vm247 = vcmp.eq.f32.partialorder %v246, 8.507059e+37
    %v248 = vand.u32 %v211, 2147483648
    %v249 = vor.u32 1.1754944e-38, %v248
    %v250 = vsel %vm247, %v249, %v245
    %v251 = vmul.f32 1.0, %v250
    %v252 = vrcp.pop %v212
    %v253 = vmul.f32 %v212, %v252
    %v254 = vsub.f32 1.0, %v253
    %v255 = vmul.f32 %v252, %v254
    %v256 = vadd.f32 %v252, %v255
    %vm257 = vweird.f32 %v212
    %vm258 = vweird.f32 %v252
    %vm259 = vmor %vm257, %vm258
    %v260 = vsel %vm259, %v252, %v256
    %v261 = vand.u32 2147483647, %v212
    %vm262 = vcmp.eq.f32.partialorder %v261, 8.507059e+37
    %v263 = vand.u32 %v212, 2147483648
    %v264 = vor.u32 1.1754944e-38, %v263
    %v265 = vsel %vm262, %v264, %v260
    %v266 = vmul.f32 1.0, %v265
    %v267 = vrcp.pop %v213
    %v268 = vmul.f32 %v213, %v267
    %v269 = vsub.f32 1.0, %v268
    %v270 = vmul.f32 %v267, %v269
    %v271 = vadd.f32 %v267, %v270
    %vm272 = vweird.f32 %v213
    %vm273 = vweird.f32 %v267
    %vm274 = vmor %vm272, %vm273
    %v275 = vsel %vm274, %v267, %v271
    %v276 = vand.u32 2147483647, %v213
    %vm277 = vcmp.eq.f32.partialorder %v276, 8.507059e+37
    %v278 = vand.u32 %v213, 2147483648
    %v279 = vor.u32 1.1754944e-38, %v278
    %v280 = vsel %vm277, %v279, %v275
    %v281 = vmul.f32 1.0, %v280
    %v282 = vrcp.pop %v214
    %v283 = vmul.f32 %v214, %v282
    %v284 = vsub.f32 1.0, %v283
    %v285 = vmul.f32 %v282, %v284
    %v286 = vadd.f32 %v282, %v285
    %vm287 = vweird.f32 %v214
    %vm288 = vweird.f32 %v282
    %vm289 = vmor %vm287, %vm288
    %v290 = vsel %vm289, %v282, %v286
    %v291 = vand.u32 2147483647, %v214
    %vm292 = vcmp.eq.f32.partialorder %v291, 8.507059e+37
    %v293 = vand.u32 %v214, 2147483648
    %v294 = vor.u32 1.1754944e-38, %v293
    %v295 = vsel %vm292, %v294, %v290
    %v296 = vmul.f32 1.0, %v295
    %v297 = vrcp.pop %v215
    %v298 = vmul.f32 %v215, %v297
    %v299 = vsub.f32 1.0, %v298
    %v300 = vmul.f32 %v297, %v299
    %v301 = vadd.f32 %v297, %v300
    %vm302 = vweird.f32 %v215
    %vm303 = vweird.f32 %v297
    %vm304 = vmor %vm302, %vm303
    %v305 = vsel %vm304, %v297, %v301
    %v306 = vand.u32 2147483647, %v215
    %vm307 = vcmp.eq.f32.partialorder %v306, 8.507059e+37
    %v308 = vand.u32 %v215, 2147483648
    %v309 = vor.u32 1.1754944e-38, %v308
    %v310 = vsel %vm307, %v309, %v305
    %v311 = vmul.f32 1.0, %v310
    %v312 = vrcp.pop %v216
    %v313 = vmul.f32 %v216, %v312
    %v314 = vsub.f32 1.0, %v313
    %v315 = vmul.f32 %v312, %v314
    %v316 = vadd.f32 %v312, %v315
    %vm317 = vweird.f32 %v216
    %vm318 = vweird.f32 %v312
    %vm319 = vmor %vm317, %vm318
    %v320 = vsel %vm319, %v312, %v316
    %v321 = vand.u32 2147483647, %v216
    %vm322 = vcmp.eq.f32.partialorder %v321, 8.507059e+37
    %v323 = vand.u32 %v216, 2147483648
    %v324 = vor.u32 1.1754944e-38, %v323
    %v325 = vsel %vm322, %v324, %v320
    %v326 = vmul.f32 1.0, %v325
    %v327 = vrcp.pop %v217
    %v328 = vmul.f32 %v217, %v327
    %v329 = vsub.f32 1.0, %v328
    %v330 = vmul.f32 %v327, %v329
    %v331 = vadd.f32 %v327, %v330
    %vm332 = vweird.f32 %v217
    %vm333 = vweird.f32 %v327
    %vm334 = vmor %vm332, %vm333
    %v335 = vsel %vm334, %v327, %v331
    %v336 = vand.u32 2147483647, %v217
    %vm337 = vcmp.eq.f32.partialorder %v336, 8.507059e+37
    %v338 = vand.u32 %v217, 2147483648
    %v339 = vor.u32 1.1754944e-38, %v338
    %v340 = vsel %vm337, %v339, %v335
    %v341 = vmul.f32 1.0, %v340
    %v342 = vrcp.pop %v218
    %v343 = vmul.f32 %v218, %v342
    %v344 = vsub.f32 1.0, %v343
    %v345 = vmul.f32 %v342, %v344
    %v346 = vadd.f32 %v342, %v345
    %vm347 = vweird.f32 %v218
    %vm348 = vweird.f32 %v342
    %vm349 = vmor %vm347, %vm348
    %v350 = vsel %vm349, %v342, %v346
    %v351 = vand.u32 2147483647, %v218
    %vm352 = vcmp.eq.f32.partialorder %v351, 8.507059e+37
    %v353 = vand.u32 %v218, 2147483648
    %v354 = vor.u32 1.1754944e-38, %v353
    %v355 = vsel %vm352, %v354, %v350
    %v356 = vmul.f32 1.0, %v355
    %v357 = vrcp.pop %v219
    %v358 = vmul.f32 %v219, %v357
    %v359 = vsub.f32 1.0, %v358
    %v360 = vmul.f32 %v357, %v359
    %v361 = vadd.f32 %v357, %v360
    %vm362 = vweird.f32 %v219
    %vm363 = vweird.f32 %v357
    %vm364 = vmor %vm362, %vm363
    %v365 = vsel %vm364, %v357, %v361
    %v366 = vand.u32 2147483647, %v219
    %vm367 = vcmp.eq.f32.partialorder %v366, 8.507059e+37
    %v368 = vand.u32 %v219, 2147483648
    %v369 = vor.u32 1.1754944e-38, %v368
    %v370 = vsel %vm367, %v369, %v365
    %v371 = vmul.f32 1.0, %v370
    %v372 = vrcp.pop %v220
    %v373 = vmul.f32 %v220, %v372
    %v374 = vsub.f32 1.0, %v373
    %v375 = vmul.f32 %v372, %v374
    %v376 = vadd.f32 %v372, %v375
    %vm377 = vweird.f32 %v220
    %vm378 = vweird.f32 %v372
    %vm379 = vmor %vm377, %vm378
    %v380 = vsel %vm379, %v372, %v376
    %v381 = vand.u32 2147483647, %v220
    %vm382 = vcmp.eq.f32.partialorder %v381, 8.507059e+37
    %v383 = vand.u32 %v220, 2147483648
    %v384 = vor.u32 1.1754944e-38, %v383
    %v385 = vsel %vm382, %v384, %v380
    %v386 = vmul.f32 1.0, %v385
    %v387 = vrcp.pop %v221
    %v388 = vmul.f32 %v221, %v387
    %v389 = vsub.f32 1.0, %v388
    %v390 = vmul.f32 %v387, %v389
    %v391 = vadd.f32 %v387, %v390
    %vm392 = vweird.f32 %v221
    %vm393 = vweird.f32 %v387
    %vm394 = vmor %vm392, %vm393
    %v395 = vsel %vm394, %v387, %v391
    %v396 = vand.u32 2147483647, %v221
    %vm397 = vcmp.eq.f32.partialorder %v396, 8.507059e+37
    %v398 = vand.u32 %v221, 2147483648
    %v399 = vor.u32 1.1754944e-38, %v398
    %v400 = vsel %vm397, %v399, %v395
    %v401 = vmul.f32 1.0, %v400
    %v402 = vmul.f32 %v105, %v236
    %v403 = vmul.f32 %v134, %v251
    %v404 = vmul.f32 %v163, %v266
    %v405 = vmul.f32 %v108, %v281
    %v406 = vmul.f32 %v137, %v296
    %v407 = vmul.f32 %v166, %v311
    %v408 = vmul.f32 %v111, %v326
    %v409 = vmul.f32 %v140, %v341
    %v410 = vmul.f32 %v169, %v356
    %v411 = vmul.f32 %v114, %v371
    %v412 = vmul.f32 %v143, %v386
    %v413 = vmul.f32 %v172, %v401
    %v414 = vld [vmem:[%s2] sm:$0x7]
    %v416 = vperm.slane %v414, 0
    %v417 = vperm.slane %v414, 1
    %v418 = vperm.slane %v414, 2
    %v422 = vmul.f32 %v402, %v416
    %v423 = vmul.f32 %v403, %v417
    %v424 = vmul.f32 %v404, %v418
    %v425 = vmul.f32 %v405, %v416
    %v426 = vmul.f32 %v406, %v417
    %v427 = vmul.f32 %v407, %v418
    %v428 = vmul.f32 %v408, %v416
    %v429 = vmul.f32 %v409, %v417
    %v430 = vmul.f32 %v410, %v418
    %v431 = vmul.f32 %v411, %v416
    %v432 = vmul.f32 %v412, %v417
    %v433 = vmul.f32 %v413, %v418
    %434 = vst [vmem:[%s3] sm:$0xff] %v422
    %435 = vst [vmem:[%s3 + $0x8] sm:$0xff] %v423
    %436 = vst [vmem:[%s3 + $0x10] sm:$0xff] %v424
    %437 = vst [vmem:[%s3 + $0x18] sm:$0xff] %v425
    %438 = vst [vmem:[%s3 + $0x20] sm:$0xff] %v426
    %439 = vst [vmem:[%s3 + $0x28] sm:$0xff] %v427
    %440 = vst [vmem:[%s3 + $0x30] sm:$0xff] %v428
    %441 = vst [vmem:[%s3 + $0x38] sm:$0xff] %v429
    %442 = vst [vmem:[%s3 + $0x40] sm:$0xff] %v430
    %443 = vst [vmem:[%s3 + $0x48] sm:$0xff] %v431
    %444 = vst [vmem:[%s3 + $0x50] sm:$0xff] %v432
    %445 = vst [vmem:[%s3 + $0x58] sm:$0xff] %v433
    // Predicated region
    $region22: #{multi_scale_gau_retention.3} parent=1 // pred_check
      _
    $region23: #{multi_scale_gau_retention.3} parent=1 // pred_check_branch
      %447 = sbr.rel (0) target = $region25
    $region24: #{multi_scale_gau_retention.3} parent=1 // pred_region
      _
    $region25: #{multi_scale_gau_retention.3} parent=1 // pred_fallthru
      _
    // Predicated region
    $region26: #{multi_scale_gau_retention.3} parent=1 // pred_check
      _
    $region27: #{multi_scale_gau_retention.3} parent=1 // pred_check_branch
      %449 = sbr.rel (0) target = $region29
    $region28: #{multi_scale_gau_retention.3} parent=1 // pred_region
      _
    $region29: #{multi_scale_gau_retention.3} parent=1 // pred_fallthru
      _
    %450 = vsyncpa [#allocation3], 1
    %451 = vsyncpa [#allocation5], 1

</llo_original>
